<compile_context>
chip_gen: v5e
topology: v5e:2x2
jax: 0.10.0
libtpu: 0.0.40
codegen_flags: <defaults>
</compile_context>

<pallas_src>
import functools

import jax
import jax.numpy as jnp
import numpy as np
from jax.experimental import pallas as pl
from jax.experimental.pallas import tpu as pltpu


_TM = 128                      # node-row tile (output rows per grid-i step)
_LANE = 128                    # lane width / padding quantum
_TK_MAX = 2048                 # max streamed node-column tile for stage 2
_VMEM_LIMIT_BYTES = 48 * 1024 * 1024   # < 64 MiB physical on v7x


def _round_up(x, m):
    return (x + m - 1) // m * m


def _pick_tk(nn_pad, tk_max):
    """Largest multiple of 128 that divides nn_pad and is <= tk_max."""
    if nn_pad <= tk_max:
        return nn_pad
    a = nn_pad // _LANE
    best = 1
    for d in range(1, tk_max // _LANE + 1):
        if a % d == 0:
            best = d
    return best * _LANE


def _maybe_buffered_spec(block_shape, index_map, buffer_count):
    """Deeper (triple) buffering on the streamed support input when the API
    supports it; falls back to the default double-buffered BlockSpec."""
    if hasattr(pl, "Buffered"):
        try:
            return pl.BlockSpec(block_shape, index_map,
                                pipeline_mode=pl.Buffered(buffer_count))
        except TypeError:
            pass
    return pl.BlockSpec(block_shape, index_map)


# ----------------------------------------------------------------------------
# Fused EdgeGraphConvolution kernels
#   out[i*tm:(i+1)*tm, :] = ReLU( sum_p A_p[tile_i, :] @ (H @ W_p) )
# ----------------------------------------------------------------------------
def _egc_single_k_kernel(h_ref, w_ref, s_ref, o_ref, *, p_edge, f_out_pad):
    """Whole padded node dim fits in one contraction block: no scratch, no
    accumulator round-trip, ReLU fused into the (lane-dense) store."""
    acc = None
    for p in range(p_edge):
        xw_p = jnp.dot(
            h_ref[...], w_ref[:, pl.ds(p * f_out_pad, f_out_pad)],
            preferred_element_type=jnp.float32).astype(jnp.bfloat16)
        term = jnp.dot(s_ref[p], xw_p, preferred_element_type=jnp.float32)
        acc = term if acc is None else acc + term
    o_ref[...] = jnp.maximum(acc, 0.0).astype(o_ref.dtype)


def _egc_multi_k_kernel(h_ref, w_ref, s_ref, o_ref, xw_ref, acc_ref,
                        *, p_edge, f_out_pad, tk):
    """K-streamed path for larger graphs: XW is computed once per node-row tile
    into VMEM scratch (k==0) and reused across the streamed support columns."""
    k = pl.program_id(1)

    @pl.when(k == 0)
    def _stage1():
        for p in range(p_edge):
            xw_ref[:, pl.ds(p * f_out_pad, f_out_pad)] = jnp.dot(
                h_ref[...], w_ref[:, pl.ds(p * f_out_pad, f_out_pad)],
                preferred_element_type=jnp.float32).astype(xw_ref.dtype)

    row0 = pl.multiple_of(k * tk, tk)
    part = None
    for p in range(p_edge):
        term = jnp.dot(
            s_ref[p],
            xw_ref[pl.ds(row0, tk), pl.ds(p * f_out_pad, f_out_pad)],
            preferred_element_type=jnp.float32)
        part = term if part is None else part + term

    @pl.when(k == 0)
    def _init():
        acc_ref[...] = part            # init-by-assign: no zero-fill pass

    @pl.when(k > 0)
    def _accum():
        acc_ref[...] += part

    @pl.when(k == pl.num_programs(1) - 1)
    def _finish():
        o_ref[...] = jnp.maximum(acc_ref[...], 0.0).astype(o_ref.dtype)


def egc_layer(h_pad, w_cat, support_pad, *, f_out_pad, out_dtype,
              tk_max=_TK_MAX):
    """One fused EdgeGraphConvolution layer.

    h_pad:       [Nn_pad, F_in_pad]           (bf16, padded)
    w_cat:       [F_in_pad, P * F_out_pad]    (bf16, channel-concatenated)
    support_pad: [P, Nn_pad, Nn_pad]          (bf16, zero-padded, native layout)
    returns      [Nn_pad, F_out_pad]          (out_dtype)
    """
    p_edge, nn_pad, _ = support_pad.shape
    f_in_pad = h_pad.shape[1]
    assert h_pad.shape == (nn_pad, f_in_pad)
    assert w_cat.shape == (f_in_pad, p_edge * f_out_pad)

    tm = _TM
    tk = _pick_tk(nn_pad, tk_max)
    nk = nn_pad // tk
    grid_i = nn_pad // tm

    if nk == 1:
        kernel = functools.partial(_egc_single_k_kernel,
                                   p_edge=p_edge, f_out_pad=f_out_pad)
        grid = (grid_i,)
        in_specs = [
            pl.BlockSpec((nn_pad, f_in_pad), lambda i: (0, 0)),
            pl.BlockSpec((f_in_pad, p_edge * f_out_pad), lambda i: (0, 0)),
            pl.BlockSpec((p_edge, tm, nn_pad), lambda i: (0, i, 0)),
        ]
        out_specs = pl.BlockSpec((tm, f_out_pad), lambda i: (i, 0))
        scratch_shapes = []
        dims = ("parallel",)
    else:
        kernel = functools.partial(_egc_multi_k_kernel,
                                   p_edge=p_edge, f_out_pad=f_out_pad, tk=tk)
        grid = (grid_i, nk)
        in_specs = [
            pl.BlockSpec((nn_pad, f_in_pad), lambda i, k: (0, 0)),
            pl.BlockSpec((f_in_pad, p_edge * f_out_pad), lambda i, k: (0, 0)),
            _maybe_buffered_spec((p_edge, tm, tk), lambda i, k: (0, i, k), 3),
        ]
        out_specs = pl.BlockSpec((tm, f_out_pad), lambda i, k: (i, 0))
        scratch_shapes = [
            pltpu.VMEM((nn_pad, p_edge * f_out_pad), jnp.bfloat16),  # XW
            pltpu.VMEM((tm, f_out_pad), jnp.float32),                # acc
        ]
        dims = ("parallel", "arbitrary")

    return pl.pallas_call(
        kernel,
        out_shape=jax.ShapeDtypeStruct((nn_pad, f_out_pad), out_dtype),
        grid_spec=pltpu.PrefetchScalarGridSpec(
            num_scalar_prefetch=0,
            grid=grid,
            in_specs=in_specs,
            out_specs=out_specs,
            scratch_shapes=scratch_shapes,
        ),
        compiler_params=pltpu.CompilerParams(
            dimension_semantics=dims,
            vmem_limit_bytes=_VMEM_LIMIT_BYTES),
    )(h_pad, w_cat, support_pad)


# ----------------------------------------------------------------------------
# EGCN model: one-time layout prep + jitted two-layer forward
# ----------------------------------------------------------------------------
def prepare_egcn(params, support):
    """One-time layout prep (call OUTSIDE jit): graph structure and weights are
    static across forward calls, so pad + cast to the bf16 kernel layouts once.
    Row-normalization of `support` must be done by the caller in f32 first."""
    w1 = jnp.asarray(params["w1"], jnp.float32)
    w2 = jnp.asarray(params["w2"], jnp.float32)
    p_edge, in_dim, hid_dim = w1.shape
    out_dim = int(w2.shape[-1])
    nn = support.shape[1]

    nn_pad = _round_up(nn, _TM)
    in_pad = _round_up(in_dim, _LANE)
    hid_pad = _round_up(hid_dim, _LANE)
    out_pad = _round_up(out_dim, _LANE)

    # Support: zero-pad only (kernel consumes the native [P, Nn, Nn] layout;
    # no transpose/reshape of the big tensor), then cast to bf16.
    s = jnp.pad(support.astype(jnp.float32),
                ((0, 0), (0, nn_pad - nn), (0, nn_pad - nn))).astype(jnp.bfloat16)

    def cat_w(w, fi_pad, fo_pad):
        p, fi, fo = w.shape
        wp = jnp.pad(w, ((0, 0), (0, fi_pad - fi), (0, fo_pad - fo)))
        # [P, Fi_pad, Fo_pad] -> [Fi_pad, P*Fo_pad]; column index = p*Fo_pad + f
        return jnp.transpose(wp, (1, 0, 2)).reshape(
            fi_pad, p * fo_pad).astype(jnp.bfloat16)

    return dict(support=s,
                w1_cat=cat_w(w1, in_pad, hid_pad),
                w2_cat=cat_w(w2, hid_pad, out_pad),
                out_dim=out_dim)


@functools.partial(jax.jit, static_argnames=("out_dim", "tk_max"))
def egcn_forward(x, support_b, w1_cat, w2_cat, *, out_dim, tk_max=_TK_MAX):
    """x: [Nn, input_dim] f32.  Returns [Nn, output_dim] f32 node features.
    (The PyTorch layers also thread `support` through the Sequential; only the
    node-feature output is returned here.)"""
    p_edge, nn_pad, _ = support_b.shape
    in_pad = w1_cat.shape[0]
    hid_pad = w1_cat.shape[1] // p_edge
    out_pad = w2_cat.shape[1] // p_edge
    nn, in_dim = x.shape

    # TODO(synk): dropout defaults to 0 (inference identity); the sparse-input
    #             dropout path of EdgeGraphConvolution is not implemented.
    h0 = jnp.pad(x.astype(jnp.bfloat16),
                 ((0, nn_pad - nn), (0, in_pad - in_dim)))

    # Layer 1 -> bf16 padded activations feed layer 2 directly (padding == 0).
    h1 = egc_layer(h0, w1_cat, support_b, f_out_pad=hid_pad,
                   out_dtype=jnp.bfloat16, tk_max=tk_max)
    h2 = egc_layer(h1, w2_cat, support_b, f_out_pad=out_pad,
                   out_dtype=jnp.float32, tk_max=tk_max)
    return h2[:nn, :out_dim]


def egcn_apply(x, prep, *, tk_max=_TK_MAX):
    return egcn_forward(x, prep["support"], prep["w1_cat"], prep["w2_cat"],
                        out_dim=prep["out_dim"], tk_max=tk_max)


def init_params(key, input_dim, hidden_dim, output_dim, edge_emb_dim):
    k1, k2 = jax.random.split(key)

    def glorot(k, shape, fan_in, fan_out):
        bound = np.sqrt(6.0 / (fan_in + fan_out))
        return jax.random.uniform(k, shape, jnp.float32, -bound, bound)

    return dict(
        w1=glorot(k1, (edge_emb_dim, input_dim, hidden_dim), input_dim, hidden_dim),
        w2=glorot(k2, (edge_emb_dim, hidden_dim, output_dim), hidden_dim, output_dim),
    )


# ----------------------------------------------------------------------------
# Pure-JAX f32 reference (for correctness check)
# ----------------------------------------------------------------------------
def reference_forward(x, support, params):
    def layer(h, w):
        xw = jnp.einsum("nf,pfo->pno", h, w)
        out = jnp.einsum("pnm,pmo->no", support, xw)
        return jnp.maximum(out, 0.0)

    h = layer(x, params["w1"])
    return layer(h, params["w2"])


if __name__ == "__main__":
    root = jax.random.PRNGKey(0)
    k_case1, k_case2 = jax.random.split(root)

    def make_case(key, n_nodes, input_dim, hidden_dim, output_dim,
                  edge_emb_dim, fix_degree):
        kx, ka, kp = jax.random.split(key, 3)
        x = jax.random.normal(kx, (n_nodes, input_dim), jnp.float32)
        # Row-normalized random adjacency (with self loops) per edge channel,
        # normalization kept in f32 before any bf16 cast.
        adj = (jax.random.uniform(ka, (edge_emb_dim, n_nodes, n_nodes))
               < (fix_degree / n_nodes)).astype(jnp.float32)
        adj = adj + jnp.eye(n_nodes, dtype=jnp.float32)[None]
        support = adj / jnp.sum(adj, axis=-1, keepdims=True)
        params = init_params(kp, input_dim, hidden_dim, output_dim, edge_emb_dim)
        return x, support, params

    # Case 1: module-consistent small shapes -> fused single-K fast path
    # (num_nodes=64, input_dim=16, hidden_dim=32, output_dim=8, P=4, FixDegree=3).
    x1, s1, p1 = make_case(k_case1, 64, 16, 32, 8, 4, 3)
    prep1 = prepare_egcn(p1, s1)
    out1 = jax.block_until_ready(egcn_apply(x1, prep1))
    ref1 = reference_forward(x1, s1, p1)
    assert out1.shape == ref1.shape == (64, 8), (out1.shape, ref1.shape)
    # bf16 MXU operands + bf16 inter-layer handoff -> few-percent tolerance.
    np.testing.assert_allclose(np.asarray(out1), np.asarray(ref1),
                               rtol=5e-2, atol=3e-2)

    # Case 2: exercise the streamed multi-K accumulator path at small shapes
    # by capping the K tile (200 nodes -> Nn_pad=256, two K steps).
    x2, s2, p2 = make_case(k_case2, 200, 16, 32, 8, 4, 3)
    prep2 = prepare_egcn(p2, s2)
    out2 = jax.block_until_ready(egcn_apply(x2, prep2, tk_max=128))
    ref2 = reference_forward(x2, s2, p2)
    assert out2.shape == ref2.shape == (200, 8), (out2.shape, ref2.shape)
    np.testing.assert_allclose(np.asarray(out2), np.asarray(ref2),
                               rtol=5e-2, atol=3e-2)

    print("KERNEL_OK")
</pallas_src>

<mosaic_0001>
module attributes {stable_mosaic.version = 11 : i64} {
  func.func @_egc_single_k_kernel(%arg0: i32, %arg1: memref<128x128xbf16, #tpu.memory_space<vmem>>, %arg2: memref<128x512xbf16, #tpu.memory_space<vmem>>, %arg3: memref<4x128x128xbf16, #tpu.memory_space<vmem>>, %arg4: memref<128x128xf32, #tpu.memory_space<vmem>>) attributes {dimension_semantics = [#tpu.dimension_semantics<parallel>], iteration_bounds = array<i64: 1>, scalar_prefetch = 0 : i64, scratch_operands = 0 : i64, tpu.core_type = #tpu.core_type<tc>, window_params = [{pipeline_mode = #tpu.pipeline_mode<synchronous>, transform_indices = @transform_0, window_bounds = array<i64: 128, 128>}, {pipeline_mode = #tpu.pipeline_mode<synchronous>, transform_indices = @transform_1, window_bounds = array<i64: 128, 512>}, {transform_indices = @transform_2, window_bounds = array<i64: 4, 128, 128>}, {transform_indices = @transform_3, window_bounds = array<i64: 128, 128>}]} {
    %c0 = arith.constant 0 : index
    %c0_0 = arith.constant 0 : index
    %0 = vector.load %arg1[%c0, %c0_0] : memref<128x128xbf16, #tpu.memory_space<vmem>>, vector<128x128xbf16>
    %c0_1 = arith.constant 0 : index
    %c0_2 = arith.constant 0 : index
    %1 = vector.load %arg2[%c0_1, %c0_2] : memref<128x512xbf16, #tpu.memory_space<vmem>>, vector<128x128xbf16>
    %cst = arith.constant dense<0.000000e+00> : vector<128x128xf32>
    %2 = tpu.matmul %0, %1, %cst {dimension_numbers = #tpu.dot_dimension_numbers<[1], [0], [0], [1], [0, 0, 1, 1], [], []>} : vector<128x128xbf16>, vector<128x128xbf16>, vector<128x128xf32> -> vector<128x128xf32>
    %3 = arith.truncf %2 : vector<128x128xf32> to vector<128x128xbf16>
    %c0_3 = arith.constant 0 : index
    %c0_4 = arith.constant 0 : index
    %c0_5 = arith.constant 0 : index
    %4 = vector.load %arg3[%c0_3, %c0_4, %c0_5] : memref<4x128x128xbf16, #tpu.memory_space<vmem>>, vector<1x128x128xbf16>
    %5 = vector.shape_cast %4 : vector<1x128x128xbf16> to vector<128x128xbf16>
    %cst_6 = arith.constant dense<0.000000e+00> : vector<128x128xf32>
    %6 = tpu.matmul %5, %3, %cst_6 {dimension_numbers = #tpu.dot_dimension_numbers<[1], [0], [0], [1], [0, 0, 1, 1], [], []>} : vector<128x128xbf16>, vector<128x128xbf16>, vector<128x128xf32> -> vector<128x128xf32>
    %c0_7 = arith.constant 0 : index
    %c0_8 = arith.constant 0 : index
    %7 = vector.load %arg1[%c0_7, %c0_8] : memref<128x128xbf16, #tpu.memory_space<vmem>>, vector<128x128xbf16>
    %c0_9 = arith.constant 0 : index
    %c128 = arith.constant 128 : index
    %8 = vector.load %arg2[%c0_9, %c128] : memref<128x512xbf16, #tpu.memory_space<vmem>>, vector<128x128xbf16>
    %cst_10 = arith.constant dense<0.000000e+00> : vector<128x128xf32>
    %9 = tpu.matmul %7, %8, %cst_10 {dimension_numbers = #tpu.dot_dimension_numbers<[1], [0], [0], [1], [0, 0, 1, 1], [], []>} : vector<128x128xbf16>, vector<128x128xbf16>, vector<128x128xf32> -> vector<128x128xf32>
    %10 = arith.truncf %9 : vector<128x128xf32> to vector<128x128xbf16>
    %c1 = arith.constant 1 : index
    %c0_11 = arith.constant 0 : index
    %c0_12 = arith.constant 0 : index
    %11 = vector.load %arg3[%c1, %c0_11, %c0_12] : memref<4x128x128xbf16, #tpu.memory_space<vmem>>, vector<1x128x128xbf16>
    %12 = vector.shape_cast %11 : vector<1x128x128xbf16> to vector<128x128xbf16>
    %cst_13 = arith.constant dense<0.000000e+00> : vector<128x128xf32>
    %13 = tpu.matmul %12, %10, %cst_13 {dimension_numbers = #tpu.dot_dimension_numbers<[1], [0], [0], [1], [0, 0, 1, 1], [], []>} : vector<128x128xbf16>, vector<128x128xbf16>, vector<128x128xf32> -> vector<128x128xf32>
    %14 = arith.addf %6, %13 : vector<128x128xf32>
    %c0_14 = arith.constant 0 : index
    %c0_15 = arith.constant 0 : index
    %15 = vector.load %arg1[%c0_14, %c0_15] : memref<128x128xbf16, #tpu.memory_space<vmem>>, vector<128x128xbf16>
    %c0_16 = arith.constant 0 : index
    %c256 = arith.constant 256 : index
    %16 = vector.load %arg2[%c0_16, %c256] : memref<128x512xbf16, #tpu.memory_space<vmem>>, vector<128x128xbf16>
    %cst_17 = arith.constant dense<0.000000e+00> : vector<128x128xf32>
    %17 = tpu.matmul %15, %16, %cst_17 {dimension_numbers = #tpu.dot_dimension_numbers<[1], [0], [0], [1], [0, 0, 1, 1], [], []>} : vector<128x128xbf16>, vector<128x128xbf16>, vector<128x128xf32> -> vector<128x128xf32>
    %18 = arith.truncf %17 : vector<128x128xf32> to vector<128x128xbf16>
    %c2 = arith.constant 2 : index
    %c0_18 = arith.constant 0 : index
    %c0_19 = arith.constant 0 : index
    %19 = vector.load %arg3[%c2, %c0_18, %c0_19] : memref<4x128x128xbf16, #tpu.memory_space<vmem>>, vector<1x128x128xbf16>
    %20 = vector.shape_cast %19 : vector<1x128x128xbf16> to vector<128x128xbf16>
    %cst_20 = arith.constant dense<0.000000e+00> : vector<128x128xf32>
    %21 = tpu.matmul %20, %18, %cst_20 {dimension_numbers = #tpu.dot_dimension_numbers<[1], [0], [0], [1], [0, 0, 1, 1], [], []>} : vector<128x128xbf16>, vector<128x128xbf16>, vector<128x128xf32> -> vector<128x128xf32>
    %22 = arith.addf %14, %21 : vector<128x128xf32>
    %c0_21 = arith.constant 0 : index
    %c0_22 = arith.constant 0 : index
    %23 = vector.load %arg1[%c0_21, %c0_22] : memref<128x128xbf16, #tpu.memory_space<vmem>>, vector<128x128xbf16>
    %c0_23 = arith.constant 0 : index
    %c384 = arith.constant 384 : index
    %24 = vector.load %arg2[%c0_23, %c384] : memref<128x512xbf16, #tpu.memory_space<vmem>>, vector<128x128xbf16>
    %cst_24 = arith.constant dense<0.000000e+00> : vector<128x128xf32>
    %25 = tpu.matmul %23, %24, %cst_24 {dimension_numbers = #tpu.dot_dimension_numbers<[1], [0], [0], [1], [0, 0, 1, 1], [], []>} : vector<128x128xbf16>, vector<128x128xbf16>, vector<128x128xf32> -> vector<128x128xf32>
    %26 = arith.truncf %25 : vector<128x128xf32> to vector<128x128xbf16>
    %c3 = arith.constant 3 : index
    %c0_25 = arith.constant 0 : index
    %c0_26 = arith.constant 0 : index
    %27 = vector.load %arg3[%c3, %c0_25, %c0_26] : memref<4x128x128xbf16, #tpu.memory_space<vmem>>, vector<1x128x128xbf16>
    %28 = vector.shape_cast %27 : vector<1x128x128xbf16> to vector<128x128xbf16>
    %cst_27 = arith.constant dense<0.000000e+00> : vector<128x128xf32>
    %29 = tpu.matmul %28, %26, %cst_27 {dimension_numbers = #tpu.dot_dimension_numbers<[1], [0], [0], [1], [0, 0, 1, 1], [], []>} : vector<128x128xbf16>, vector<128x128xbf16>, vector<128x128xf32> -> vector<128x128xf32>
    %30 = arith.addf %22, %29 : vector<128x128xf32>
    %cst_28 = arith.constant 0.000000e+00 : f32
    %31 = vector.broadcast %cst_28 : f32 to vector<128x128xf32>
    %32 = arith.maximumf %30, %31 : vector<128x128xf32>
    %c0_29 = arith.constant 0 : index
    %c0_30 = arith.constant 0 : index
    %33 = vector.load %arg4[%c0_29, %c0_30] : memref<128x128xf32, #tpu.memory_space<vmem>>, vector<128x128xf32>
    tpu.vector_store %arg4[%c0_29, %c0_30], %32 {strides = array<i32>} : memref<128x128xf32, #tpu.memory_space<vmem>>, vector<128x128xf32>,
    return
  }
  func.func @transform_0(%arg0: i32) -> (i32, i32) {
    %c0_i32 = arith.constant 0 : i32
    %c0_i32_0 = arith.constant 0 : i32
    %c0_i32_1 = arith.constant 0 : i32
    return %c0_i32, %c0_i32_0 : i32, i32
  }
  func.func @transform_1(%arg0: i32) -> (i32, i32) {
    %c0_i32 = arith.constant 0 : i32
    %c0_i32_0 = arith.constant 0 : i32
    %c0_i32_1 = arith.constant 0 : i32
    return %c0_i32, %c0_i32_0 : i32, i32
  }
  func.func @transform_2(%arg0: i32) -> (i32, i32, i32) {
    %c0_i32 = arith.constant 0 : i32
    %c0_i32_0 = arith.constant 0 : i32
    %c0_i32_1 = arith.constant 0 : i32
    return %c0_i32, %arg0, %c0_i32_0 : i32, i32, i32
  }
  func.func @transform_3(%arg0: i32) -> (i32, i32) {
    %c0_i32 = arith.constant 0 : i32
    %c0_i32_0 = arith.constant 0 : i32
    return %arg0, %c0_i32 : i32, i32
  }
}

module attributes {stable_mosaic.version = 11 : i64} {
  func.func @_egc_single_k_kernel(%arg0: i32, %arg1: memref<128x128xbf16, #tpu.memory_space<vmem>>, %arg2: memref<128x512xbf16, #tpu.memory_space<vmem>>, %arg3: memref<4x128x128xbf16, #tpu.memory_space<vmem>>, %arg4: memref<128x128xbf16, #tpu.memory_space<vmem>>) attributes {dimension_semantics = [#tpu.dimension_semantics<parallel>], iteration_bounds = array<i64: 1>, scalar_prefetch = 0 : i64, scratch_operands = 0 : i64, tpu.core_type = #tpu.core_type<tc>, window_params = [{pipeline_mode = #tpu.pipeline_mode<synchronous>, transform_indices = @transform_0, window_bounds = array<i64: 128, 128>}, {pipeline_mode = #tpu.pipeline_mode<synchronous>, transform_indices = @transform_1, window_bounds = array<i64: 128, 512>}, {transform_indices = @transform_2, window_bounds = array<i64: 4, 128, 128>}, {transform_indices = @transform_3, window_bounds = array<i64: 128, 128>}]} {
    %c0 = arith.constant 0 : index
    %c0_0 = arith.constant 0 : index
    %0 = vector.load %arg1[%c0, %c0_0] : memref<128x128xbf16, #tpu.memory_space<vmem>>, vector<128x128xbf16>
    %c0_1 = arith.constant 0 : index
    %c0_2 = arith.constant 0 : index
    %1 = vector.load %arg2[%c0_1, %c0_2] : memref<128x512xbf16, #tpu.memory_space<vmem>>, vector<128x128xbf16>
    %cst = arith.constant dense<0.000000e+00> : vector<128x128xf32>
    %2 = tpu.matmul %0, %1, %cst {dimension_numbers = #tpu.dot_dimension_numbers<[1], [0], [0], [1], [0, 0, 1, 1], [], []>} : vector<128x128xbf16>, vector<128x128xbf16>, vector<128x128xf32> -> vector<128x128xf32>
    %3 = arith.truncf %2 : vector<128x128xf32> to vector<128x128xbf16>
    %c0_3 = arith.constant 0 : index
    %c0_4 = arith.constant 0 : index
    %c0_5 = arith.constant 0 : index
    %4 = vector.load %arg3[%c0_3, %c0_4, %c0_5] : memref<4x128x128xbf16, #tpu.memory_space<vmem>>, vector<1x128x128xbf16>
    %5 = vector.shape_cast %4 : vector<1x128x128xbf16> to vector<128x128xbf16>
    %cst_6 = arith.constant dense<0.000000e+00> : vector<128x128xf32>
    %6 = tpu.matmul %5, %3, %cst_6 {dimension_numbers = #tpu.dot_dimension_numbers<[1], [0], [0], [1], [0, 0, 1, 1], [], []>} : vector<128x128xbf16>, vector<128x128xbf16>, vector<128x128xf32> -> vector<128x128xf32>
    %c0_7 = arith.constant 0 : index
    %c0_8 = arith.constant 0 : index
    %7 = vector.load %arg1[%c0_7, %c0_8] : memref<128x128xbf16, #tpu.memory_space<vmem>>, vector<128x128xbf16>
    %c0_9 = arith.constant 0 : index
    %c128 = arith.constant 128 : index
    %8 = vector.load %arg2[%c0_9, %c128] : memref<128x512xbf16, #tpu.memory_space<vmem>>, vector<128x128xbf16>
    %cst_10 = arith.constant dense<0.000000e+00> : vector<128x128xf32>
    %9 = tpu.matmul %7, %8, %cst_10 {dimension_numbers = #tpu.dot_dimension_numbers<[1], [0], [0], [1], [0, 0, 1, 1], [], []>} : vector<128x128xbf16>, vector<128x128xbf16>, vector<128x128xf32> -> vector<128x128xf32>
    %10 = arith.truncf %9 : vector<128x128xf32> to vector<128x128xbf16>
    %c1 = arith.constant 1 : index
    %c0_11 = arith.constant 0 : index
    %c0_12 = arith.constant 0 : index
    %11 = vector.load %arg3[%c1, %c0_11, %c0_12] : memref<4x128x128xbf16, #tpu.memory_space<vmem>>, vector<1x128x128xbf16>
    %12 = vector.shape_cast %11 : vector<1x128x128xbf16> to vector<128x128xbf16>
    %cst_13 = arith.constant dense<0.000000e+00> : vector<128x128xf32>
    %13 = tpu.matmul %12, %10, %cst_13 {dimension_numbers = #tpu.dot_dimension_numbers<[1], [0], [0], [1], [0, 0, 1, 1], [], []>} : vector<128x128xbf16>, vector<128x128xbf16>, vector<128x128xf32> -> vector<128x128xf32>
    %14 = arith.addf %6, %13 : vector<128x128xf32>
    %c0_14 = arith.constant 0 : index
    %c0_15 = arith.constant 0 : index
    %15 = vector.load %arg1[%c0_14, %c0_15] : memref<128x128xbf16, #tpu.memory_space<vmem>>, vector<128x128xbf16>
    %c0_16 = arith.constant 0 : index
    %c256 = arith.constant 256 : index
    %16 = vector.load %arg2[%c0_16, %c256] : memref<128x512xbf16, #tpu.memory_space<vmem>>, vector<128x128xbf16>
    %cst_17 = arith.constant dense<0.000000e+00> : vector<128x128xf32>
    %17 = tpu.matmul %15, %16, %cst_17 {dimension_numbers = #tpu.dot_dimension_numbers<[1], [0], [0], [1], [0, 0, 1, 1], [], []>} : vector<128x128xbf16>, vector<128x128xbf16>, vector<128x128xf32> -> vector<128x128xf32>
    %18 = arith.truncf %17 : vector<128x128xf32> to vector<128x128xbf16>
    %c2 = arith.constant 2 : index
    %c0_18 = arith.constant 0 : index
    %c0_19 = arith.constant 0 : index
    %19 = vector.load %arg3[%c2, %c0_18, %c0_19] : memref<4x128x128xbf16, #tpu.memory_space<vmem>>, vector<1x128x128xbf16>
    %20 = vector.shape_cast %19 : vector<1x128x128xbf16> to vector<128x128xbf16>
    %cst_20 = arith.constant dense<0.000000e+00> : vector<128x128xf32>
    %21 = tpu.matmul %20, %18, %cst_20 {dimension_numbers = #tpu.dot_dimension_numbers<[1], [0], [0], [1], [0, 0, 1, 1], [], []>} : vector<128x128xbf16>, vector<128x128xbf16>, vector<128x128xf32> -> vector<128x128xf32>
    %22 = arith.addf %14, %21 : vector<128x128xf32>
    %c0_21 = arith.constant 0 : index
    %c0_22 = arith.constant 0 : index
    %23 = vector.load %arg1[%c0_21, %c0_22] : memref<128x128xbf16, #tpu.memory_space<vmem>>, vector<128x128xbf16>
    %c0_23 = arith.constant 0 : index
    %c384 = arith.constant 384 : index
    %24 = vector.load %arg2[%c0_23, %c384] : memref<128x512xbf16, #tpu.memory_space<vmem>>, vector<128x128xbf16>
    %cst_24 = arith.constant dense<0.000000e+00> : vector<128x128xf32>
    %25 = tpu.matmul %23, %24, %cst_24 {dimension_numbers = #tpu.dot_dimension_numbers<[1], [0], [0], [1], [0, 0, 1, 1], [], []>} : vector<128x128xbf16>, vector<128x128xbf16>, vector<128x128xf32> -> vector<128x128xf32>
    %26 = arith.truncf %25 : vector<128x128xf32> to vector<128x128xbf16>
    %c3 = arith.constant 3 : index
    %c0_25 = arith.constant 0 : index
    %c0_26 = arith.constant 0 : index
    %27 = vector.load %arg3[%c3, %c0_25, %c0_26] : memref<4x128x128xbf16, #tpu.memory_space<vmem>>, vector<1x128x128xbf16>
    %28 = vector.shape_cast %27 : vector<1x128x128xbf16> to vector<128x128xbf16>
    %cst_27 = arith.constant dense<0.000000e+00> : vector<128x128xf32>
    %29 = tpu.matmul %28, %26, %cst_27 {dimension_numbers = #tpu.dot_dimension_numbers<[1], [0], [0], [1], [0, 0, 1, 1], [], []>} : vector<128x128xbf16>, vector<128x128xbf16>, vector<128x128xf32> -> vector<128x128xf32>
    %30 = arith.addf %22, %29 : vector<128x128xf32>
    %cst_28 = arith.constant 0.000000e+00 : f32
    %31 = vector.broadcast %cst_28 : f32 to vector<128x128xf32>
    %32 = arith.maximumf %30, %31 : vector<128x128xf32>
    %33 = arith.truncf %32 : vector<128x128xf32> to vector<128x128xbf16>
    %c0_29 = arith.constant 0 : index
    %c0_30 = arith.constant 0 : index
    %34 = vector.load %arg4[%c0_29, %c0_30] : memref<128x128xbf16, #tpu.memory_space<vmem>>, vector<128x128xbf16>
    tpu.vector_store %arg4[%c0_29, %c0_30], %33 {strides = array<i32>} : memref<128x128xbf16, #tpu.memory_space<vmem>>, vector<128x128xbf16>,
    return
  }
  func.func @transform_0(%arg0: i32) -> (i32, i32) {
    %c0_i32 = arith.constant 0 : i32
    %c0_i32_0 = arith.constant 0 : i32
    %c0_i32_1 = arith.constant 0 : i32
    return %c0_i32, %c0_i32_0 : i32, i32
  }
  func.func @transform_1(%arg0: i32) -> (i32, i32) {
    %c0_i32 = arith.constant 0 : i32
    %c0_i32_0 = arith.constant 0 : i32
    %c0_i32_1 = arith.constant 0 : i32
    return %c0_i32, %c0_i32_0 : i32, i32
  }
  func.func @transform_2(%arg0: i32) -> (i32, i32, i32) {
    %c0_i32 = arith.constant 0 : i32
    %c0_i32_0 = arith.constant 0 : i32
    %c0_i32_1 = arith.constant 0 : i32
    return %c0_i32, %arg0, %c0_i32_0 : i32, i32, i32
  }
  func.func @transform_3(%arg0: i32) -> (i32, i32) {
    %c0_i32 = arith.constant 0 : i32
    %c0_i32_0 = arith.constant 0 : i32
    return %arg0, %c0_i32 : i32, i32
  }
}

</mosaic_0001>

<llo_original>
// kernel: egcn_forward.2
$region0: #{egcn_forward.2}
  #allocation0 [shape = 'u32[]', space=smem, size = 0x4, offset = 0x4, fixed_abs, tag = 'smem constant byte address 0x4 - core index']
  #allocation1 [shape = 'u32[72,128]{1,0:T(1,128)}', space=vmem, size = 0x9000, scoped, tag = 'internal scratch']
  %s0 = inlined_call_operand.vmem [shape: bf16[128,128], index: 0, kind: input, shape index: {}]
  %s1 = inlined_call_operand.hbm [shape: bf16[128,512], index: 1, kind: input, shape index: {}]
  %s2 = inlined_call_operand.hbm [shape: bf16[4,128,128], index: 2, kind: input, shape index: {}]
  %s3 = inlined_call_operand.vmem [shape: bf16[128,128], index: 3, kind: output, shape index: {}]
  %s4 = sld [smem:[#allocation0]]
  $region30: #{egcn_forward.2} parent=0
    _
  %s6 = ssub.s32 1, %s4
  %s7 = scalar_select 0, %s6, %s4
  $region1: #{egcn_forward.2} parent=0
    #allocation2 [shape = 'u8[131072]{0}', space=vmem, size = 0x20000, scoped, tag = 'input window, operand 1, single buffered']
    #allocation3 [shape = 's32[1]{0}', space=sflag, size = 0x4, scoped, tag = 'scoped memory for egcn_forward.2']
    #allocation4 [shape = 'u8[131072]{0}', space=vmem, size = 0x20000, scoped, tag = 'input window, operand 2, single buffered']
    #allocation5 [shape = 's32[1]{0}', space=sflag, size = 0x4, scoped, tag = 'scoped memory for egcn_forward.2']
    %8 = vsyncpa [#allocation3], 0
    %9 = vsyncpa [#allocation5], 0
    // Predicated region
    $region2: #{egcn_forward.2} parent=1 // pred_check
      _
    $region3: #{egcn_forward.2} parent=1 // pred_check_branch
      %11 = sbr.rel (0) target = $region5
    $region4: #{egcn_forward.2} parent=1 // pred_region
      _
    $region5: #{egcn_forward.2} parent=1 // pred_fallthru
      _
    // Predicated region
    $region6: #{egcn_forward.2} parent=1 // pred_check
      _
    $region7: #{egcn_forward.2} parent=1 // pred_check_branch
      %13 = sbr.rel (0) target = $region9
    $region8: #{egcn_forward.2} parent=1 // pred_region
      %15 = vsyncadd [#allocation3], 0
      %s16 = sshll.u32 %s1, 4
      %s17 = int_to_ptr.hbm [resolvable:$true] %s16
      %s18 = sshll.u32 [#allocation2], 4
      %s19 = int_to_ptr.vmem [resolvable:$true] %s18
      %24 = dma.hbm_to_vmem [thread:$0]  %s17, 4096, %s19, [#allocation3], 256, 256, 16
    $region9: #{egcn_forward.2} parent=1 // pred_fallthru
      _
    // Predicated region
    $region10: #{egcn_forward.2} parent=1 // pred_check
      _
    $region11: #{egcn_forward.2} parent=1 // pred_check_branch
      %26 = sbr.rel (0) target = $region13
    $region12: #{egcn_forward.2} parent=1 // pred_region
      %28 = vsyncadd [#allocation5], 0
      %s29 = sshll.u32 %s2, 4
      %s30 = int_to_ptr.hbm [resolvable:$true] %s29
      %s31 = sshll.u32 [#allocation4], 4
      %s32 = int_to_ptr.vmem [resolvable:$true] %s31
      %37 = dma.hbm_to_vmem [thread:$0]  %s30, 4096, %s32, [#allocation5], 64, 64, 4
    $region13: #{egcn_forward.2} parent=1 // pred_fallthru
      _
    // Predicated region
    $region14: #{egcn_forward.2} parent=1 // pred_check
      _
    $region15: #{egcn_forward.2} parent=1 // pred_check_branch
      %39 = sbr.rel (0) target = $region17
    $region16: #{egcn_forward.2} parent=1 // pred_region
      %41 = dma.done [#allocation3], 4096
    $region17: #{egcn_forward.2} parent=1 // pred_fallthru
      _
    // Predicated region
    $region18: #{egcn_forward.2} parent=1 // pred_check
      _
    $region19: #{egcn_forward.2} parent=1 // pred_check_branch
      %43 = sbr.rel (0) target = $region21
    $region20: #{egcn_forward.2} parent=1 // pred_region
      %45 = dma.done [#allocation5], 4096
    $region21: #{egcn_forward.2} parent=1 // pred_fallthru
      _
    %v46 = vld [vmem:[%s0] sm:$0xf]
    %v47 = vld [vmem:[%s0 + $0x4] sm:$0xf]
    %v48 = vld [vmem:[%s0 + $0x8] sm:$0xf]
    %v49 = vld [vmem:[%s0 + $0xc] sm:$0xf]
    %v50 = vld [vmem:[%s0 + $0x10] sm:$0xf]
    %v51 = vld [vmem:[%s0 + $0x14] sm:$0xf]
    %v52 = vld [vmem:[%s0 + $0x18] sm:$0xf]
    %v53 = vld [vmem:[%s0 + $0x1c] sm:$0xf]
    %v54 = vld [vmem:[%s0 + $0x20] sm:$0xf]
    %v55 = vld [vmem:[%s0 + $0x24] sm:$0xf]
    %v56 = vld [vmem:[%s0 + $0x28] sm:$0xf]
    %v57 = vld [vmem:[%s0 + $0x2c] sm:$0xf]
    %v58 = vld [vmem:[%s0 + $0x30] sm:$0xf]
    %v59 = vld [vmem:[%s0 + $0x34] sm:$0xf]
    %v60 = vld [vmem:[%s0 + $0x38] sm:$0xf]
    %v61 = vld [vmem:[%s0 + $0x3c] sm:$0xf]
    %v62 = vld [vmem:[#allocation2] sm:$0xf]
    %v63 = vld [vmem:[#allocation2 + $0x10] sm:$0xf]
    %v64 = vld [vmem:[#allocation2 + $0x20] sm:$0xf]
    %v65 = vld [vmem:[#allocation2 + $0x30] sm:$0xf]
    %v66 = vld [vmem:[#allocation2 + $0x40] sm:$0xf]
    %v67 = vld [vmem:[#allocation2 + $0x50] sm:$0xf]
    %v68 = vld [vmem:[#allocation2 + $0x60] sm:$0xf]
    %v69 = vld [vmem:[#allocation2 + $0x70] sm:$0xf]
    %v70 = vld [vmem:[#allocation2 + $0x80] sm:$0xf]
    %v71 = vld [vmem:[#allocation2 + $0x90] sm:$0xf]
    %v72 = vld [vmem:[#allocation2 + $0xa0] sm:$0xf]
    %v73 = vld [vmem:[#allocation2 + $0xb0] sm:$0xf]
    %v74 = vld [vmem:[#allocation2 + $0xc0] sm:$0xf]
    %v75 = vld [vmem:[#allocation2 + $0xd0] sm:$0xf]
    %v76 = vld [vmem:[#allocation2 + $0xe0] sm:$0xf]
    %v77 = vld [vmem:[#allocation2 + $0xf0] sm:$0xf]
    %v94 = vunpack.c.l.b16 %v46
    %v95 = vunpack.c.l.b16 %v47
    %v96 = vunpack.c.l.b16 %v48
    %v97 = vunpack.c.l.b16 %v49
    %v98 = vunpack.c.l.b16 %v50
    %v99 = vunpack.c.l.b16 %v51
    %v100 = vunpack.c.l.b16 %v52
    %v101 = vunpack.c.l.b16 %v53
    %v102 = vunpack.c.l.b16 %v54
    %v103 = vunpack.c.l.b16 %v55
    %v104 = vunpack.c.l.b16 %v56
    %v105 = vunpack.c.l.b16 %v57
    %v106 = vunpack.c.l.b16 %v58
    %v107 = vunpack.c.l.b16 %v59
    %v108 = vunpack.c.l.b16 %v60
    %v109 = vunpack.c.l.b16 %v61
    %v110 = vpack.c.b16 %v95, %v94
    %v111 = vpack.c.b16 %v97, %v96
    %v112 = vpack.c.b16 %v99, %v98
    %v113 = vpack.c.b16 %v101, %v100
    %v114 = vpack.c.b16 %v103, %v102
    %v115 = vpack.c.b16 %v105, %v104
    %v116 = vpack.c.b16 %v107, %v106
    %v117 = vpack.c.b16 %v109, %v108
    %v142 = vunpack.c.l.b16 %v62
    %v143 = vunpack.c.l.b16 %v63
    %v144 = vunpack.c.l.b16 %v64
    %v145 = vunpack.c.l.b16 %v65
    %v146 = vunpack.c.l.b16 %v66
    %v147 = vunpack.c.l.b16 %v67
    %v148 = vunpack.c.l.b16 %v68
    %v149 = vunpack.c.l.b16 %v69
    %v150 = vunpack.c.l.b16 %v70
    %v151 = vunpack.c.l.b16 %v71
    %v152 = vunpack.c.l.b16 %v72
    %v153 = vunpack.c.l.b16 %v73
    %v154 = vunpack.c.l.b16 %v74
    %v155 = vunpack.c.l.b16 %v75
    %v156 = vunpack.c.l.b16 %v76
    %v157 = vunpack.c.l.b16 %v77
    %v158 = vpack.c.b16 %v143, %v142
    %v159 = vpack.c.b16 %v145, %v144
    %v160 = vpack.c.b16 %v147, %v146
    %v161 = vpack.c.b16 %v149, %v148
    %v162 = vpack.c.b16 %v151, %v150
    %v163 = vpack.c.b16 %v153, %v152
    %v164 = vpack.c.b16 %v155, %v154
    %v165 = vpack.c.b16 %v157, %v156
    %174 = vmatpush.bf16.msra.mxu0 %v165
    %175 = vmatpush.bf16.msra.mxu0 %v164
    %176 = vmatpush.bf16.msra.mxu0 %v163
    %177 = vmatpush.bf16.msra.mxu0 %v162
    %178 = vmatpush.bf16.msra.mxu0 %v161
    %179 = vmatpush.bf16.msra.mxu0 %v160
    %180 = vmatpush.bf16.msra.mxu0 %v159
    %181 = vmatpush.bf16.msra.mxu0 %v158
    %182 = vmatmul.bf16.gmra.mxu0 %v110
    %v183 = vpop.f32.mrf.mxu0
    %v184 = vadd.f32 0.0, %v183
    %v185 = vpop.f32.mrf.mxu0
    %v186 = vadd.f32 0.0, %v185
    %187 = vmatmul.bf16.gmra.mxu0 %v111
    %v188 = vpop.f32.mrf.mxu0
    %v189 = vadd.f32 0.0, %v188
    %v190 = vpop.f32.mrf.mxu0
    %v191 = vadd.f32 0.0, %v190
    %192 = vmatmul.bf16.gmra.mxu0 %v112
    %v193 = vpop.f32.mrf.mxu0
    %v194 = vadd.f32 0.0, %v193
    %v195 = vpop.f32.mrf.mxu0
    %v196 = vadd.f32 0.0, %v195
    %197 = vmatmul.bf16.gmra.mxu0 %v113
    %v198 = vpop.f32.mrf.mxu0
    %v199 = vadd.f32 0.0, %v198
    %v200 = vpop.f32.mrf.mxu0
    %v201 = vadd.f32 0.0, %v200
    %202 = vmatmul.bf16.gmra.mxu0 %v114
    %v203 = vpop.f32.mrf.mxu0
    %v204 = vadd.f32 0.0, %v203
    %v205 = vpop.f32.mrf.mxu0
    %v206 = vadd.f32 0.0, %v205
    %207 = vmatmul.bf16.gmra.mxu0 %v115
    %v208 = vpop.f32.mrf.mxu0
    %v209 = vadd.f32 0.0, %v208
    %v210 = vpop.f32.mrf.mxu0
    %v211 = vadd.f32 0.0, %v210
    %212 = vmatmul.bf16.gmra.mxu0 %v116
    %v213 = vpop.f32.mrf.mxu0
    %v214 = vadd.f32 0.0, %v213
    %v215 = vpop.f32.mrf.mxu0
    %v216 = vadd.f32 0.0, %v215
    %217 = vmatmul.bf16.gmra.mxu0 %v117
    %v218 = vpop.f32.mrf.mxu0
    %v219 = vadd.f32 0.0, %v218
    %v220 = vpop.f32.mrf.mxu0
    %v221 = vadd.f32 0.0, %v220
    %222 = vdwg.mxu0
    %v223 = vpack.c.bf16 %v186, %v184
    %v224 = vpack.c.bf16 %v191, %v189
    %v225 = vpack.c.bf16 %v196, %v194
    %v226 = vpack.c.bf16 %v201, %v199
    %v227 = vpack.c.bf16 %v206, %v204
    %v228 = vpack.c.bf16 %v211, %v209
    %v229 = vpack.c.bf16 %v216, %v214
    %v230 = vpack.c.bf16 %v221, %v219
    %v231 = vld [vmem:[#allocation4] sm:$0xf]
    %v232 = vld [vmem:[#allocation4 + $0x4] sm:$0xf]
    %v233 = vld [vmem:[#allocation4 + $0x8] sm:$0xf]
    %v234 = vld [vmem:[#allocation4 + $0xc] sm:$0xf]
    %v235 = vld [vmem:[#allocation4 + $0x10] sm:$0xf]
    %v236 = vld [vmem:[#allocation4 + $0x14] sm:$0xf]
    %v237 = vld [vmem:[#allocation4 + $0x18] sm:$0xf]
    %v238 = vld [vmem:[#allocation4 + $0x1c] sm:$0xf]
    %v239 = vld [vmem:[#allocation4 + $0x20] sm:$0xf]
    %v240 = vld [vmem:[#allocation4 + $0x24] sm:$0xf]
    %v241 = vld [vmem:[#allocation4 + $0x28] sm:$0xf]
    %v242 = vld [vmem:[#allocation4 + $0x2c] sm:$0xf]
    %v243 = vld [vmem:[#allocation4 + $0x30] sm:$0xf]
    %v244 = vld [vmem:[#allocation4 + $0x34] sm:$0xf]
    %v245 = vld [vmem:[#allocation4 + $0x38] sm:$0xf]
    %v246 = vld [vmem:[#allocation4 + $0x3c] sm:$0xf]
    %v247 = vld [vmem:[#allocation2 + $0x4] sm:$0xf]
    %v248 = vld [vmem:[#allocation2 + $0x14] sm:$0xf]
    %v249 = vld [vmem:[#allocation2 + $0x24] sm:$0xf]
    %v250 = vld [vmem:[#allocation2 + $0x34] sm:$0xf]
    %v251 = vld [vmem:[#allocation2 + $0x44] sm:$0xf]
    %v252 = vld [vmem:[#allocation2 + $0x54] sm:$0xf]
    %v253 = vld [vmem:[#allocation2 + $0x64] sm:$0xf]
    %v254 = vld [vmem:[#allocation2 + $0x74] sm:$0xf]
    %v255 = vld [vmem:[#allocation2 + $0x84] sm:$0xf]
    %v256 = vld [vmem:[#allocation2 + $0x94] sm:$0xf]
    %v257 = vld [vmem:[#allocation2 + $0xa4] sm:$0xf]
    %v258 = vld [vmem:[#allocation2 + $0xb4] sm:$0xf]
    %v259 = vld [vmem:[#allocation2 + $0xc4] sm:$0xf]
    %v260 = vld [vmem:[#allocation2 + $0xd4] sm:$0xf]
    %v261 = vld [vmem:[#allocation2 + $0xe4] sm:$0xf]
    %v262 = vld [vmem:[#allocation2 + $0xf4] sm:$0xf]
    %v279 = vunpack.c.l.b16 %v247
    %v280 = vunpack.c.l.b16 %v248
    %v281 = vunpack.c.l.b16 %v249
    %v282 = vunpack.c.l.b16 %v250
    %v283 = vunpack.c.l.b16 %v251
    %v284 = vunpack.c.l.b16 %v252
    %v285 = vunpack.c.l.b16 %v253
    %v286 = vunpack.c.l.b16 %v254
    %v287 = vunpack.c.l.b16 %v255
    %v288 = vunpack.c.l.b16 %v256
    %v289 = vunpack.c.l.b16 %v257
    %v290 = vunpack.c.l.b16 %v258
    %v291 = vunpack.c.l.b16 %v259
    %v292 = vunpack.c.l.b16 %v260
    %v293 = vunpack.c.l.b16 %v261
    %v294 = vunpack.c.l.b16 %v262
    %v295 = vpack.c.b16 %v280, %v279
    %v296 = vpack.c.b16 %v282, %v281
    %v297 = vpack.c.b16 %v284, %v283
    %v298 = vpack.c.b16 %v286, %v285
    %v299 = vpack.c.b16 %v288, %v287
    %v300 = vpack.c.b16 %v290, %v289
    %v301 = vpack.c.b16 %v292, %v291
    %v302 = vpack.c.b16 %v294, %v293
    %311 = vmatpush.bf16.msra.mxu0 %v302
    %312 = vmatpush.bf16.msra.mxu0 %v301
    %313 = vmatpush.bf16.msra.mxu0 %v300
    %314 = vmatpush.bf16.msra.mxu0 %v299
    %315 = vmatpush.bf16.msra.mxu0 %v298
    %316 = vmatpush.bf16.msra.mxu0 %v297
    %317 = vmatpush.bf16.msra.mxu0 %v296
    %318 = vmatpush.bf16.msra.mxu0 %v295
    %319 = vmatmul.bf16.gmra.mxu0 %v110
    %v320 = vpop.f32.mrf.mxu0
    %v321 = vadd.f32 0.0, %v320
    %v322 = vpop.f32.mrf.mxu0
    %v323 = vadd.f32 0.0, %v322
    %324 = vmatmul.bf16.gmra.mxu0 %v111
    %v325 = vpop.f32.mrf.mxu0
    %v326 = vadd.f32 0.0, %v325
    %v327 = vpop.f32.mrf.mxu0
    %v328 = vadd.f32 0.0, %v327
    %329 = vmatmul.bf16.gmra.mxu0 %v112
    %v330 = vpop.f32.mrf.mxu0
    %v331 = vadd.f32 0.0, %v330
    %v332 = vpop.f32.mrf.mxu0
    %v333 = vadd.f32 0.0, %v332
    %334 = vmatmul.bf16.gmra.mxu0 %v113
    %v335 = vpop.f32.mrf.mxu0
    %v336 = vadd.f32 0.0, %v335
    %v337 = vpop.f32.mrf.mxu0
    %v338 = vadd.f32 0.0, %v337
    %339 = vmatmul.bf16.gmra.mxu0 %v114
    %v340 = vpop.f32.mrf.mxu0
    %v341 = vadd.f32 0.0, %v340
    %v342 = vpop.f32.mrf.mxu0
    %v343 = vadd.f32 0.0, %v342
    %344 = vmatmul.bf16.gmra.mxu0 %v115
    %v345 = vpop.f32.mrf.mxu0
    %v346 = vadd.f32 0.0, %v345
    %v347 = vpop.f32.mrf.mxu0
    %v348 = vadd.f32 0.0, %v347
    %349 = vmatmul.bf16.gmra.mxu0 %v116
    %v350 = vpop.f32.mrf.mxu0
    %v351 = vadd.f32 0.0, %v350
    %v352 = vpop.f32.mrf.mxu0
    %v353 = vadd.f32 0.0, %v352
    %354 = vmatmul.bf16.gmra.mxu0 %v117
    %v355 = vpop.f32.mrf.mxu0
    %v356 = vadd.f32 0.0, %v355
    %v357 = vpop.f32.mrf.mxu0
    %v358 = vadd.f32 0.0, %v357
    %359 = vdwg.mxu0
    %v360 = vpack.c.bf16 %v323, %v321
    %v361 = vpack.c.bf16 %v328, %v326
    %v362 = vpack.c.bf16 %v333, %v331
    %v363 = vpack.c.bf16 %v338, %v336
    %v364 = vpack.c.bf16 %v343, %v341
    %v365 = vpack.c.bf16 %v348, %v346
    %v366 = vpack.c.bf16 %v353, %v351
    %v367 = vpack.c.bf16 %v358, %v356
    %s368 = scalar_lea.vmem [#allocation4], 64
    %v369 = vld [vmem:[%s368] sm:$0xf]
    %v370 = vld [vmem:[%s368 + $0x4] sm:$0xf]
    %v371 = vld [vmem:[%s368 + $0x8] sm:$0xf]
    %v372 = vld [vmem:[%s368 + $0xc] sm:$0xf]
    %v373 = vld [vmem:[%s368 + $0x10] sm:$0xf]
    %v374 = vld [vmem:[%s368 + $0x14] sm:$0xf]
    %v375 = vld [vmem:[%s368 + $0x18] sm:$0xf]
    %v376 = vld [vmem:[%s368 + $0x1c] sm:$0xf]
    %v377 = vld [vmem:[%s368 + $0x20] sm:$0xf]
    %v378 = vld [vmem:[%s368 + $0x24] sm:$0xf]
    %v379 = vld [vmem:[%s368 + $0x28] sm:$0xf]
    %v380 = vld [vmem:[%s368 + $0x2c] sm:$0xf]
    %v381 = vld [vmem:[%s368 + $0x30] sm:$0xf]
    %v382 = vld [vmem:[%s368 + $0x34] sm:$0xf]
    %v383 = vld [vmem:[%s368 + $0x38] sm:$0xf]
    %v384 = vld [vmem:[%s368 + $0x3c] sm:$0xf]
    %v401 = vunpack.c.l.b16 %v369
    %v402 = vunpack.c.l.b16 %v370
    %v403 = vunpack.c.l.b16 %v371
    %v404 = vunpack.c.l.b16 %v372
    %v405 = vunpack.c.l.b16 %v373
    %v406 = vunpack.c.l.b16 %v374
    %v407 = vunpack.c.l.b16 %v375
    %v408 = vunpack.c.l.b16 %v376
    %v409 = vunpack.c.l.b16 %v377
    %v410 = vunpack.c.l.b16 %v378
    %v411 = vunpack.c.l.b16 %v379
    %v412 = vunpack.c.l.b16 %v380
    %v413 = vunpack.c.l.b16 %v381
    %v414 = vunpack.c.l.b16 %v382
    %v415 = vunpack.c.l.b16 %v383
    %v416 = vunpack.c.l.b16 %v384
    %v417 = vpack.c.b16 %v402, %v401
    %v418 = vpack.c.b16 %v404, %v403
    %v419 = vpack.c.b16 %v406, %v405
    %v420 = vpack.c.b16 %v408, %v407
    %v421 = vpack.c.b16 %v410, %v409
    %v422 = vpack.c.b16 %v412, %v411
    %v423 = vpack.c.b16 %v414, %v413
    %v424 = vpack.c.b16 %v416, %v415
    %433 = vmatpush.bf16.msra.mxu0 %v367
    %434 = vmatpush.bf16.msra.mxu0 %v366
    %435 = vmatpush.bf16.msra.mxu0 %v365
    %436 = vmatpush.bf16.msra.mxu0 %v364
    %437 = vmatpush.bf16.msra.mxu0 %v363
    %438 = vmatpush.bf16.msra.mxu0 %v362
    %439 = vmatpush.bf16.msra.mxu0 %v361
    %440 = vmatpush.bf16.msra.mxu0 %v360
    %441 = vmatmul.bf16.gmra.mxu0 %v417
    %v442 = vpop.f32.mrf.mxu0
    %v443 = vadd.f32 0.0, %v442
    %v444 = vpop.f32.mrf.mxu0
    %v445 = vadd.f32 0.0, %v444
    %446 = vmatmul.bf16.gmra.mxu0 %v418
    %v447 = vpop.f32.mrf.mxu0
    %v448 = vadd.f32 0.0, %v447
    %v449 = vpop.f32.mrf.mxu0
    %v450 = vadd.f32 0.0, %v449
    %451 = vmatmul.bf16.gmra.mxu0 %v419
    %v452 = vpop.f32.mrf.mxu0
    %v453 = vadd.f32 0.0, %v452
    %v454 = vpop.f32.mrf.mxu0
    %v455 = vadd.f32 0.0, %v454
    %456 = vmatmul.bf16.gmra.mxu0 %v420
    %v457 = vpop.f32.mrf.mxu0
    %v458 = vadd.f32 0.0, %v457
    %v459 = vpop.f32.mrf.mxu0
    %v460 = vadd.f32 0.0, %v459
    %461 = vmatmul.bf16.gmra.mxu0 %v421
    %v462 = vpop.f32.mrf.mxu0
    %v463 = vadd.f32 0.0, %v462
    %v464 = vpop.f32.mrf.mxu0
    %v465 = vadd.f32 0.0, %v464
    %466 = vmatmul.bf16.gmra.mxu0 %v422
    %v467 = vpop.f32.mrf.mxu0
    %v468 = vadd.f32 0.0, %v467
    %v469 = vpop.f32.mrf.mxu0
    %v470 = vadd.f32 0.0, %v469
    %471 = vmatmul.bf16.gmra.mxu0 %v423
    %v472 = vpop.f32.mrf.mxu0
    %v473 = vadd.f32 0.0, %v472
    %v474 = vpop.f32.mrf.mxu0
    %v475 = vadd.f32 0.0, %v474
    %476 = vmatmul.bf16.gmra.mxu0 %v424
    %v477 = vpop.f32.mrf.mxu0
    %v478 = vadd.f32 0.0, %v477
    %v479 = vpop.f32.mrf.mxu0
    %v480 = vadd.f32 0.0, %v479
    %481 = vdwg.mxu0
    %v498 = vunpack.c.l.b16 %v231
    %v499 = vunpack.c.l.b16 %v232
    %v500 = vunpack.c.l.b16 %v233
    %v501 = vunpack.c.l.b16 %v234
    %v502 = vunpack.c.l.b16 %v235
    %v503 = vunpack.c.l.b16 %v236
    %v504 = vunpack.c.l.b16 %v237
    %v505 = vunpack.c.l.b16 %v238
    %v506 = vunpack.c.l.b16 %v239
    %v507 = vunpack.c.l.b16 %v240
    %v508 = vunpack.c.l.b16 %v241
    %v509 = vunpack.c.l.b16 %v242
    %v510 = vunpack.c.l.b16 %v243
    %v511 = vunpack.c.l.b16 %v244
    %v512 = vunpack.c.l.b16 %v245
    %v513 = vunpack.c.l.b16 %v246
    %v514 = vpack.c.b16 %v499, %v498
    %v515 = vpack.c.b16 %v501, %v500
    %v516 = vpack.c.b16 %v503, %v502
    %v517 = vpack.c.b16 %v505, %v504
    %v518 = vpack.c.b16 %v507, %v506
    %v519 = vpack.c.b16 %v509, %v508
    %v520 = vpack.c.b16 %v511, %v510
    %v521 = vpack.c.b16 %v513, %v512
    %530 = vmatpush.bf16.msra.mxu0 %v230
    %531 = vmatpush.bf16.msra.mxu0 %v229
    %532 = vmatpush.bf16.msra.mxu0 %v228
    %533 = vmatpush.bf16.msra.mxu0 %v227
    %534 = vmatpush.bf16.msra.mxu0 %v226
    %535 = vmatpush.bf16.msra.mxu0 %v225
    %536 = vmatpush.bf16.msra.mxu0 %v224
    %537 = vmatpush.bf16.msra.mxu0 %v223
    %538 = vmatmul.bf16.gmra.mxu0 %v514
    %v539 = vpop.f32.mrf.mxu0
    %v540 = vadd.f32 %v443, %v539
    %v541 = vpop.f32.mrf.mxu0
    %v542 = vadd.f32 %v445, %v541
    %543 = vmatmul.bf16.gmra.mxu0 %v515
    %v544 = vpop.f32.mrf.mxu0
    %v545 = vadd.f32 %v448, %v544
    %v546 = vpop.f32.mrf.mxu0
    %v547 = vadd.f32 %v450, %v546
    %548 = vmatmul.bf16.gmra.mxu0 %v516
    %v549 = vpop.f32.mrf.mxu0
    %v550 = vadd.f32 %v453, %v549
    %v551 = vpop.f32.mrf.mxu0
    %v552 = vadd.f32 %v455, %v551
    %553 = vmatmul.bf16.gmra.mxu0 %v517
    %v554 = vpop.f32.mrf.mxu0
    %v555 = vadd.f32 %v458, %v554
    %v556 = vpop.f32.mrf.mxu0
    %v557 = vadd.f32 %v460, %v556
    %558 = vmatmul.bf16.gmra.mxu0 %v518
    %v559 = vpop.f32.mrf.mxu0
    %v560 = vadd.f32 %v463, %v559
    %v561 = vpop.f32.mrf.mxu0
    %v562 = vadd.f32 %v465, %v561
    %563 = vmatmul.bf16.gmra.mxu0 %v519
    %v564 = vpop.f32.mrf.mxu0
    %v565 = vadd.f32 %v468, %v564
    %v566 = vpop.f32.mrf.mxu0
    %v567 = vadd.f32 %v470, %v566
    %568 = vmatmul.bf16.gmra.mxu0 %v520
    %v569 = vpop.f32.mrf.mxu0
    %v570 = vadd.f32 %v473, %v569
    %v571 = vpop.f32.mrf.mxu0
    %v572 = vadd.f32 %v475, %v571
    %573 = vmatmul.bf16.gmra.mxu0 %v521
    %v574 = vpop.f32.mrf.mxu0
    %v575 = vadd.f32 %v478, %v574
    %v576 = vpop.f32.mrf.mxu0
    %v577 = vadd.f32 %v480, %v576
    %578 = vdwg.mxu0
    %v579 = vld [vmem:[#allocation2 + $0x8] sm:$0xf]
    %v580 = vld [vmem:[#allocation2 + $0x18] sm:$0xf]
    %v581 = vld [vmem:[#allocation2 + $0x28] sm:$0xf]
    %v582 = vld [vmem:[#allocation2 + $0x38] sm:$0xf]
    %v583 = vld [vmem:[#allocation2 + $0x48] sm:$0xf]
    %v584 = vld [vmem:[#allocation2 + $0x58] sm:$0xf]
    %v585 = vld [vmem:[#allocation2 + $0x68] sm:$0xf]
    %v586 = vld [vmem:[#allocation2 + $0x78] sm:$0xf]
    %v587 = vld [vmem:[#allocation2 + $0x88] sm:$0xf]
    %v588 = vld [vmem:[#allocation2 + $0x98] sm:$0xf]
    %v589 = vld [vmem:[#allocation2 + $0xa8] sm:$0xf]
    %v590 = vld [vmem:[#allocation2 + $0xb8] sm:$0xf]
    %v591 = vld [vmem:[#allocation2 + $0xc8] sm:$0xf]
    %v592 = vld [vmem:[#allocation2 + $0xd8] sm:$0xf]
    %v593 = vld [vmem:[#allocation2 + $0xe8] sm:$0xf]
    %v594 = vld [vmem:[#allocation2 + $0xf8] sm:$0xf]
    %v611 = vunpack.c.l.b16 %v579
    %v612 = vunpack.c.l.b16 %v580
    %v613 = vunpack.c.l.b16 %v581
    %v614 = vunpack.c.l.b16 %v582
    %v615 = vunpack.c.l.b16 %v583
    %v616 = vunpack.c.l.b16 %v584
    %v617 = vunpack.c.l.b16 %v585
    %v618 = vunpack.c.l.b16 %v586
    %v619 = vunpack.c.l.b16 %v587
    %v620 = vunpack.c.l.b16 %v588
    %v621 = vunpack.c.l.b16 %v589
    %v622 = vunpack.c.l.b16 %v590
    %v623 = vunpack.c.l.b16 %v591
    %v624 = vunpack.c.l.b16 %v592
    %v625 = vunpack.c.l.b16 %v593
    %v626 = vunpack.c.l.b16 %v594
    %v627 = vpack.c.b16 %v612, %v611
    %v628 = vpack.c.b16 %v614, %v613
    %v629 = vpack.c.b16 %v616, %v615
    %v630 = vpack.c.b16 %v618, %v617
    %v631 = vpack.c.b16 %v620, %v619
    %v632 = vpack.c.b16 %v622, %v621
    %v633 = vpack.c.b16 %v624, %v623
    %v634 = vpack.c.b16 %v626, %v625
    %643 = vmatpush.bf16.msra.mxu0 %v634
    %644 = vmatpush.bf16.msra.mxu0 %v633
    %645 = vmatpush.bf16.msra.mxu0 %v632
    %646 = vmatpush.bf16.msra.mxu0 %v631
    %647 = vmatpush.bf16.msra.mxu0 %v630
    %648 = vmatpush.bf16.msra.mxu0 %v629
    %649 = vmatpush.bf16.msra.mxu0 %v628
    %650 = vmatpush.bf16.msra.mxu0 %v627
    %651 = vmatmul.bf16.gmra.mxu0 %v110
    %v652 = vpop.f32.mrf.mxu0
    %v653 = vadd.f32 0.0, %v652
    %v654 = vpop.f32.mrf.mxu0
    %v655 = vadd.f32 0.0, %v654
    %656 = vmatmul.bf16.gmra.mxu0 %v111
    %v657 = vpop.f32.mrf.mxu0
    %v658 = vadd.f32 0.0, %v657
    %v659 = vpop.f32.mrf.mxu0
    %v660 = vadd.f32 0.0, %v659
    %661 = vmatmul.bf16.gmra.mxu0 %v112
    %v662 = vpop.f32.mrf.mxu0
    %v663 = vadd.f32 0.0, %v662
    %v664 = vpop.f32.mrf.mxu0
    %v665 = vadd.f32 0.0, %v664
    %666 = vmatmul.bf16.gmra.mxu0 %v113
    %v667 = vpop.f32.mrf.mxu0
    %v668 = vadd.f32 0.0, %v667
    %v669 = vpop.f32.mrf.mxu0
    %v670 = vadd.f32 0.0, %v669
    %671 = vmatmul.bf16.gmra.mxu0 %v114
    %v672 = vpop.f32.mrf.mxu0
    %v673 = vadd.f32 0.0, %v672
    %v674 = vpop.f32.mrf.mxu0
    %v675 = vadd.f32 0.0, %v674
    %676 = vmatmul.bf16.gmra.mxu0 %v115
    %v677 = vpop.f32.mrf.mxu0
    %v678 = vadd.f32 0.0, %v677
    %v679 = vpop.f32.mrf.mxu0
    %v680 = vadd.f32 0.0, %v679
    %681 = vmatmul.bf16.gmra.mxu0 %v116
    %v682 = vpop.f32.mrf.mxu0
    %v683 = vadd.f32 0.0, %v682
    %v684 = vpop.f32.mrf.mxu0
    %v685 = vadd.f32 0.0, %v684
    %686 = vmatmul.bf16.gmra.mxu0 %v117
    %v687 = vpop.f32.mrf.mxu0
    %v688 = vadd.f32 0.0, %v687
    %v689 = vpop.f32.mrf.mxu0
    %v690 = vadd.f32 0.0, %v689
    %691 = vdwg.mxu0
    %v692 = vpack.c.bf16 %v655, %v653
    %v693 = vpack.c.bf16 %v660, %v658
    %v694 = vpack.c.bf16 %v665, %v663
    %v695 = vpack.c.bf16 %v670, %v668
    %v696 = vpack.c.bf16 %v675, %v673
    %v697 = vpack.c.bf16 %v680, %v678
    %v698 = vpack.c.bf16 %v685, %v683
    %v699 = vpack.c.bf16 %v690, %v688
    %s700 = scalar_lea.vmem [#allocation4], 128
    %v701 = vld [vmem:[%s700] sm:$0xf]
    %v702 = vld [vmem:[%s700 + $0x4] sm:$0xf]
    %v703 = vld [vmem:[%s700 + $0x8] sm:$0xf]
    %v704 = vld [vmem:[%s700 + $0xc] sm:$0xf]
    %v705 = vld [vmem:[%s700 + $0x10] sm:$0xf]
    %v706 = vld [vmem:[%s700 + $0x14] sm:$0xf]
    %v707 = vld [vmem:[%s700 + $0x18] sm:$0xf]
    %v708 = vld [vmem:[%s700 + $0x1c] sm:$0xf]
    %v709 = vld [vmem:[%s700 + $0x20] sm:$0xf]
    %v710 = vld [vmem:[%s700 + $0x24] sm:$0xf]
    %v711 = vld [vmem:[%s700 + $0x28] sm:$0xf]
    %v712 = vld [vmem:[%s700 + $0x2c] sm:$0xf]
    %v713 = vld [vmem:[%s700 + $0x30] sm:$0xf]
    %v714 = vld [vmem:[%s700 + $0x34] sm:$0xf]
    %v715 = vld [vmem:[%s700 + $0x38] sm:$0xf]
    %v716 = vld [vmem:[%s700 + $0x3c] sm:$0xf]
    %v733 = vunpack.c.l.b16 %v701
    %v734 = vunpack.c.l.b16 %v702
    %v735 = vunpack.c.l.b16 %v703
    %v736 = vunpack.c.l.b16 %v704
    %v737 = vunpack.c.l.b16 %v705
    %v738 = vunpack.c.l.b16 %v706
    %v739 = vunpack.c.l.b16 %v707
    %v740 = vunpack.c.l.b16 %v708
    %v741 = vunpack.c.l.b16 %v709
    %v742 = vunpack.c.l.b16 %v710
    %v743 = vunpack.c.l.b16 %v711
    %v744 = vunpack.c.l.b16 %v712
    %v745 = vunpack.c.l.b16 %v713
    %v746 = vunpack.c.l.b16 %v714
    %v747 = vunpack.c.l.b16 %v715
    %v748 = vunpack.c.l.b16 %v716
    %v749 = vpack.c.b16 %v734, %v733
    %v750 = vpack.c.b16 %v736, %v735
    %v751 = vpack.c.b16 %v738, %v737
    %v752 = vpack.c.b16 %v740, %v739
    %v753 = vpack.c.b16 %v742, %v741
    %v754 = vpack.c.b16 %v744, %v743
    %v755 = vpack.c.b16 %v746, %v745
    %v756 = vpack.c.b16 %v748, %v747
    %765 = vmatpush.bf16.msra.mxu0 %v699
    %766 = vmatpush.bf16.msra.mxu0 %v698
    %767 = vmatpush.bf16.msra.mxu0 %v697
    %768 = vmatpush.bf16.msra.mxu0 %v696
    %769 = vmatpush.bf16.msra.mxu0 %v695
    %770 = vmatpush.bf16.msra.mxu0 %v694
    %771 = vmatpush.bf16.msra.mxu0 %v693
    %772 = vmatpush.bf16.msra.mxu0 %v692
    %773 = vmatmul.bf16.gmra.mxu0 %v749
    %v774 = vpop.f32.mrf.mxu0
    %v775 = vadd.f32 0.0, %v774
    %v776 = vpop.f32.mrf.mxu0
    %v777 = vadd.f32 0.0, %v776
    %778 = vmatmul.bf16.gmra.mxu0 %v750
    %v779 = vpop.f32.mrf.mxu0
    %v780 = vadd.f32 0.0, %v779
    %v781 = vpop.f32.mrf.mxu0
    %v782 = vadd.f32 0.0, %v781
    %783 = vmatmul.bf16.gmra.mxu0 %v751
    %v784 = vpop.f32.mrf.mxu0
    %v785 = vadd.f32 0.0, %v784
    %v786 = vpop.f32.mrf.mxu0
    %v787 = vadd.f32 0.0, %v786
    %788 = vmatmul.bf16.gmra.mxu0 %v752
    %v789 = vpop.f32.mrf.mxu0
    %v790 = vadd.f32 0.0, %v789
    %v791 = vpop.f32.mrf.mxu0
    %v792 = vadd.f32 0.0, %v791
    %793 = vmatmul.bf16.gmra.mxu0 %v753
    %v794 = vpop.f32.mrf.mxu0
    %v795 = vadd.f32 0.0, %v794
    %v796 = vpop.f32.mrf.mxu0
    %v797 = vadd.f32 0.0, %v796
    %798 = vmatmul.bf16.gmra.mxu0 %v754
    %v799 = vpop.f32.mrf.mxu0
    %v800 = vadd.f32 0.0, %v799
    %v801 = vpop.f32.mrf.mxu0
    %v802 = vadd.f32 0.0, %v801
    %803 = vmatmul.bf16.gmra.mxu0 %v755
    %v804 = vpop.f32.mrf.mxu0
    %v805 = vadd.f32 0.0, %v804
    %v806 = vpop.f32.mrf.mxu0
    %v807 = vadd.f32 0.0, %v806
    %808 = vmatmul.bf16.gmra.mxu0 %v756
    %v809 = vpop.f32.mrf.mxu0
    %v810 = vadd.f32 0.0, %v809
    %v811 = vpop.f32.mrf.mxu0
    %v812 = vadd.f32 0.0, %v811
    %813 = vdwg.mxu0
    %v814 = vadd.f32 %v540, %v775
    %v815 = vadd.f32 %v542, %v777
    %v816 = vadd.f32 %v545, %v780
    %v817 = vadd.f32 %v547, %v782
    %v818 = vadd.f32 %v550, %v785
    %v819 = vadd.f32 %v552, %v787
    %v820 = vadd.f32 %v555, %v790
    %v821 = vadd.f32 %v557, %v792
    %v822 = vadd.f32 %v560, %v795
    %v823 = vadd.f32 %v562, %v797
    %v824 = vadd.f32 %v565, %v800
    %v825 = vadd.f32 %v567, %v802
    %v826 = vadd.f32 %v570, %v805
    %v827 = vadd.f32 %v572, %v807
    %v828 = vadd.f32 %v575, %v810
    %v829 = vadd.f32 %v577, %v812
    %v830 = vld [vmem:[#allocation2 + $0xc] sm:$0xf]
    %v831 = vld [vmem:[#allocation2 + $0x1c] sm:$0xf]
    %v832 = vld [vmem:[#allocation2 + $0x2c] sm:$0xf]
    %v833 = vld [vmem:[#allocation2 + $0x3c] sm:$0xf]
    %v834 = vld [vmem:[#allocation2 + $0x4c] sm:$0xf]
    %v835 = vld [vmem:[#allocation2 + $0x5c] sm:$0xf]
    %v836 = vld [vmem:[#allocation2 + $0x6c] sm:$0xf]
    %v837 = vld [vmem:[#allocation2 + $0x7c] sm:$0xf]
    %v838 = vld [vmem:[#allocation2 + $0x8c] sm:$0xf]
    %v839 = vld [vmem:[#allocation2 + $0x9c] sm:$0xf]
    %v840 = vld [vmem:[#allocation2 + $0xac] sm:$0xf]
    %v841 = vld [vmem:[#allocation2 + $0xbc] sm:$0xf]
    %v842 = vld [vmem:[#allocation2 + $0xcc] sm:$0xf]
    %v843 = vld [vmem:[#allocation2 + $0xdc] sm:$0xf]
    %v844 = vld [vmem:[#allocation2 + $0xec] sm:$0xf]
    %v845 = vld [vmem:[#allocation2 + $0xfc] sm:$0xf]
    %v862 = vunpack.c.l.b16 %v830
    %v863 = vunpack.c.l.b16 %v831
    %v864 = vunpack.c.l.b16 %v832
    %v865 = vunpack.c.l.b16 %v833
    %v866 = vunpack.c.l.b16 %v834
    %v867 = vunpack.c.l.b16 %v835
    %v868 = vunpack.c.l.b16 %v836
    %v869 = vunpack.c.l.b16 %v837
    %v870 = vunpack.c.l.b16 %v838
    %v871 = vunpack.c.l.b16 %v839
    %v872 = vunpack.c.l.b16 %v840
    %v873 = vunpack.c.l.b16 %v841
    %v874 = vunpack.c.l.b16 %v842
    %v875 = vunpack.c.l.b16 %v843
    %v876 = vunpack.c.l.b16 %v844
    %v877 = vunpack.c.l.b16 %v845
    %v878 = vpack.c.b16 %v863, %v862
    %v879 = vpack.c.b16 %v865, %v864
    %v880 = vpack.c.b16 %v867, %v866
    %v881 = vpack.c.b16 %v869, %v868
    %v882 = vpack.c.b16 %v871, %v870
    %v883 = vpack.c.b16 %v873, %v872
    %v884 = vpack.c.b16 %v875, %v874
    %v885 = vpack.c.b16 %v877, %v876
    %894 = vmatpush.bf16.msra.mxu0 %v885
    %895 = vmatpush.bf16.msra.mxu0 %v884
    %896 = vmatpush.bf16.msra.mxu0 %v883
    %897 = vmatpush.bf16.msra.mxu0 %v882
    %898 = vmatpush.bf16.msra.mxu0 %v881
    %899 = vmatpush.bf16.msra.mxu0 %v880
    %900 = vmatpush.bf16.msra.mxu0 %v879
    %901 = vmatpush.bf16.msra.mxu0 %v878
    %902 = vmatmul.bf16.gmra.mxu0 %v110
    %v903 = vpop.f32.mrf.mxu0
    %v904 = vadd.f32 0.0, %v903
    %v905 = vpop.f32.mrf.mxu0
    %v906 = vadd.f32 0.0, %v905
    %907 = vmatmul.bf16.gmra.mxu0 %v111
    %v908 = vpop.f32.mrf.mxu0
    %v909 = vadd.f32 0.0, %v908
    %v910 = vpop.f32.mrf.mxu0
    %v911 = vadd.f32 0.0, %v910
    %912 = vmatmul.bf16.gmra.mxu0 %v112
    %v913 = vpop.f32.mrf.mxu0
    %v914 = vadd.f32 0.0, %v913
    %v915 = vpop.f32.mrf.mxu0
    %v916 = vadd.f32 0.0, %v915
    %917 = vmatmul.bf16.gmra.mxu0 %v113
    %v918 = vpop.f32.mrf.mxu0
    %v919 = vadd.f32 0.0, %v918
    %v920 = vpop.f32.mrf.mxu0
    %v921 = vadd.f32 0.0, %v920
    %922 = vmatmul.bf16.gmra.mxu0 %v114
    %v923 = vpop.f32.mrf.mxu0
    %v924 = vadd.f32 0.0, %v923
    %v925 = vpop.f32.mrf.mxu0
    %v926 = vadd.f32 0.0, %v925
    %927 = vmatmul.bf16.gmra.mxu0 %v115
    %v928 = vpop.f32.mrf.mxu0
    %v929 = vadd.f32 0.0, %v928
    %v930 = vpop.f32.mrf.mxu0
    %v931 = vadd.f32 0.0, %v930
    %932 = vmatmul.bf16.gmra.mxu0 %v116
    %v933 = vpop.f32.mrf.mxu0
    %v934 = vadd.f32 0.0, %v933
    %v935 = vpop.f32.mrf.mxu0
    %v936 = vadd.f32 0.0, %v935
    %937 = vmatmul.bf16.gmra.mxu0 %v117
    %v938 = vpop.f32.mrf.mxu0
    %v939 = vadd.f32 0.0, %v938
    %v940 = vpop.f32.mrf.mxu0
    %v941 = vadd.f32 0.0, %v940
    %942 = vdwg.mxu0
    %v943 = vpack.c.bf16 %v906, %v904
    %v944 = vpack.c.bf16 %v911, %v909
    %v945 = vpack.c.bf16 %v916, %v914
    %v946 = vpack.c.bf16 %v921, %v919
    %v947 = vpack.c.bf16 %v926, %v924
    %v948 = vpack.c.bf16 %v931, %v929
    %v949 = vpack.c.bf16 %v936, %v934
    %v950 = vpack.c.bf16 %v941, %v939
    %s951 = scalar_lea.vmem [#allocation4], 192
    %v952 = vld [vmem:[%s951] sm:$0xf]
    %v953 = vld [vmem:[%s951 + $0x4] sm:$0xf]
    %v954 = vld [vmem:[%s951 + $0x8] sm:$0xf]
    %v955 = vld [vmem:[%s951 + $0xc] sm:$0xf]
    %v956 = vld [vmem:[%s951 + $0x10] sm:$0xf]
    %v957 = vld [vmem:[%s951 + $0x14] sm:$0xf]
    %v958 = vld [vmem:[%s951 + $0x18] sm:$0xf]
    %v959 = vld [vmem:[%s951 + $0x1c] sm:$0xf]
    %v960 = vld [vmem:[%s951 + $0x20] sm:$0xf]
    %v961 = vld [vmem:[%s951 + $0x24] sm:$0xf]
    %v962 = vld [vmem:[%s951 + $0x28] sm:$0xf]
    %v963 = vld [vmem:[%s951 + $0x2c] sm:$0xf]
    %v964 = vld [vmem:[%s951 + $0x30] sm:$0xf]
    %v965 = vld [vmem:[%s951 + $0x34] sm:$0xf]
    %v966 = vld [vmem:[%s951 + $0x38] sm:$0xf]
    %v967 = vld [vmem:[%s951 + $0x3c] sm:$0xf]
    %v984 = vunpack.c.l.b16 %v952
    %v985 = vunpack.c.l.b16 %v953
    %v986 = vunpack.c.l.b16 %v954
    %v987 = vunpack.c.l.b16 %v955
    %v988 = vunpack.c.l.b16 %v956
    %v989 = vunpack.c.l.b16 %v957
    %v990 = vunpack.c.l.b16 %v958
    %v991 = vunpack.c.l.b16 %v959
    %v992 = vunpack.c.l.b16 %v960
    %v993 = vunpack.c.l.b16 %v961
    %v994 = vunpack.c.l.b16 %v962
    %v995 = vunpack.c.l.b16 %v963
    %v996 = vunpack.c.l.b16 %v964
    %v997 = vunpack.c.l.b16 %v965
    %v998 = vunpack.c.l.b16 %v966
    %v999 = vunpack.c.l.b16 %v967
    %v1000 = vpack.c.b16 %v985, %v984
    %v1001 = vpack.c.b16 %v987, %v986
    %v1002 = vpack.c.b16 %v989, %v988
    %v1003 = vpack.c.b16 %v991, %v990
    %v1004 = vpack.c.b16 %v993, %v992
    %v1005 = vpack.c.b16 %v995, %v994
    %v1006 = vpack.c.b16 %v997, %v996
    %v1007 = vpack.c.b16 %v999, %v998
    %1016 = vmatpush.bf16.msra.mxu0 %v950
    %1017 = vmatpush.bf16.msra.mxu0 %v949
    %1018 = vmatpush.bf16.msra.mxu0 %v948
    %1019 = vmatpush.bf16.msra.mxu0 %v947
    %1020 = vmatpush.bf16.msra.mxu0 %v946
    %1021 = vmatpush.bf16.msra.mxu0 %v945
    %1022 = vmatpush.bf16.msra.mxu0 %v944
    %1023 = vmatpush.bf16.msra.mxu0 %v943
    %1024 = vmatmul.bf16.gmra.mxu0 %v1000
    %v1025 = vpop.f32.mrf.mxu0
    %v1026 = vadd.f32 0.0, %v1025
    %v1027 = vpop.f32.mrf.mxu0
    %v1028 = vadd.f32 0.0, %v1027
    %1029 = vmatmul.bf16.gmra.mxu0 %v1001
    %v1030 = vpop.f32.mrf.mxu0
    %v1031 = vadd.f32 0.0, %v1030
    %v1032 = vpop.f32.mrf.mxu0
    %v1033 = vadd.f32 0.0, %v1032
    %1034 = vmatmul.bf16.gmra.mxu0 %v1002
    %v1035 = vpop.f32.mrf.mxu0
    %v1036 = vadd.f32 0.0, %v1035
    %v1037 = vpop.f32.mrf.mxu0
    %v1038 = vadd.f32 0.0, %v1037
    %1039 = vmatmul.bf16.gmra.mxu0 %v1003
    %v1040 = vpop.f32.mrf.mxu0
    %v1041 = vadd.f32 0.0, %v1040
    %v1042 = vpop.f32.mrf.mxu0
    %v1043 = vadd.f32 0.0, %v1042
    %1044 = vmatmul.bf16.gmra.mxu0 %v1004
    %v1045 = vpop.f32.mrf.mxu0
    %v1046 = vadd.f32 0.0, %v1045
    %v1047 = vpop.f32.mrf.mxu0
    %v1048 = vadd.f32 0.0, %v1047
    %1049 = vmatmul.bf16.gmra.mxu0 %v1005
    %v1050 = vpop.f32.mrf.mxu0
    %v1051 = vadd.f32 0.0, %v1050
    %v1052 = vpop.f32.mrf.mxu0
    %v1053 = vadd.f32 0.0, %v1052
    %1054 = vmatmul.bf16.gmra.mxu0 %v1006
    %v1055 = vpop.f32.mrf.mxu0
    %v1056 = vadd.f32 0.0, %v1055
    %v1057 = vpop.f32.mrf.mxu0
    %v1058 = vadd.f32 0.0, %v1057
    %1059 = vmatmul.bf16.gmra.mxu0 %v1007
    %v1060 = vpop.f32.mrf.mxu0
    %v1061 = vadd.f32 0.0, %v1060
    %v1062 = vpop.f32.mrf.mxu0
    %v1063 = vadd.f32 0.0, %v1062
    %1064 = vdwg.mxu0
    %v1065 = vadd.f32 %v814, %v1026
    %v1066 = vadd.f32 %v815, %v1028
    %v1067 = vadd.f32 %v816, %v1031
    %v1068 = vadd.f32 %v817, %v1033
    %v1069 = vadd.f32 %v818, %v1036
    %v1070 = vadd.f32 %v819, %v1038
    %v1071 = vadd.f32 %v820, %v1041
    %v1072 = vadd.f32 %v821, %v1043
    %v1073 = vadd.f32 %v822, %v1046
    %v1074 = vadd.f32 %v823, %v1048
    %v1075 = vadd.f32 %v824, %v1051
    %v1076 = vadd.f32 %v825, %v1053
    %v1077 = vadd.f32 %v826, %v1056
    %v1078 = vadd.f32 %v827, %v1058
    %v1079 = vadd.f32 %v828, %v1061
    %v1080 = vadd.f32 %v829, %v1063
    %v1081 = vmax.f32 %v1065, 0.0
    %v1082 = vmax.f32 %v1066, 0.0
    %v1083 = vmax.f32 %v1067, 0.0
    %v1084 = vmax.f32 %v1068, 0.0
    %v1085 = vmax.f32 %v1069, 0.0
    %v1086 = vmax.f32 %v1070, 0.0
    %v1087 = vmax.f32 %v1071, 0.0
    %v1088 = vmax.f32 %v1072, 0.0
    %v1089 = vmax.f32 %v1073, 0.0
    %v1090 = vmax.f32 %v1074, 0.0
    %v1091 = vmax.f32 %v1075, 0.0
    %v1092 = vmax.f32 %v1076, 0.0
    %v1093 = vmax.f32 %v1077, 0.0
    %v1094 = vmax.f32 %v1078, 0.0
    %v1095 = vmax.f32 %v1079, 0.0
    %v1096 = vmax.f32 %v1080, 0.0
    %v1097 = vpack.c.bf16 %v1081, %v1081
    %v1098 = vpack.c.bf16 %v1082, %v1082
    %v1099 = vpack.c.bf16 %v1083, %v1083
    %v1100 = vpack.c.bf16 %v1084, %v1084
    %v1101 = vpack.c.bf16 %v1085, %v1085
    %v1102 = vpack.c.bf16 %v1086, %v1086
    %v1103 = vpack.c.bf16 %v1087, %v1087
    %v1104 = vpack.c.bf16 %v1088, %v1088
    %v1105 = vpack.c.bf16 %v1089, %v1089
    %v1106 = vpack.c.bf16 %v1090, %v1090
    %v1107 = vpack.c.bf16 %v1091, %v1091
    %v1108 = vpack.c.bf16 %v1092, %v1092
    %v1109 = vpack.c.bf16 %v1093, %v1093
    %v1110 = vpack.c.bf16 %v1094, %v1094
    %v1111 = vpack.c.bf16 %v1095, %v1095
    %v1112 = vpack.c.bf16 %v1096, %v1096
    %1113 = vst [vmem:[%s3] sm:$0xf] %v1097
    %1114 = vst [vmem:[%s3 + $0x4] sm:$0xf] %v1098
    %1115 = vst [vmem:[%s3 + $0x8] sm:$0xf] %v1099
    %1116 = vst [vmem:[%s3 + $0xc] sm:$0xf] %v1100
    %1117 = vst [vmem:[%s3 + $0x10] sm:$0xf] %v1101
    %1118 = vst [vmem:[%s3 + $0x14] sm:$0xf] %v1102
    %1119 = vst [vmem:[%s3 + $0x18] sm:$0xf] %v1103
    %1120 = vst [vmem:[%s3 + $0x1c] sm:$0xf] %v1104
    %1121 = vst [vmem:[%s3 + $0x20] sm:$0xf] %v1105
    %1122 = vst [vmem:[%s3 + $0x24] sm:$0xf] %v1106
    %1123 = vst [vmem:[%s3 + $0x28] sm:$0xf] %v1107
    %1124 = vst [vmem:[%s3 + $0x2c] sm:$0xf] %v1108
    %1125 = vst [vmem:[%s3 + $0x30] sm:$0xf] %v1109
    %1126 = vst [vmem:[%s3 + $0x34] sm:$0xf] %v1110
    %1127 = vst [vmem:[%s3 + $0x38] sm:$0xf] %v1111
    %1128 = vst [vmem:[%s3 + $0x3c] sm:$0xf] %v1112
    // Predicated region
    $region22: #{egcn_forward.2} parent=1 // pred_check
      _
    $region23: #{egcn_forward.2} parent=1 // pred_check_branch
      %1130 = sbr.rel (0) target = $region25
    $region24: #{egcn_forward.2} parent=1 // pred_region
      _
    $region25: #{egcn_forward.2} parent=1 // pred_fallthru
      _
    // Predicated region
    $region26: #{egcn_forward.2} parent=1 // pred_check
      _
    $region27: #{egcn_forward.2} parent=1 // pred_check_branch
      %1132 = sbr.rel (0) target = $region29
    $region28: #{egcn_forward.2} parent=1 // pred_region
      _
    $region29: #{egcn_forward.2} parent=1 // pred_fallthru
      _
    %1133 = vsyncpa [#allocation3], 1
    %1134 = vsyncpa [#allocation5], 1

// kernel: egcn_forward.3
$region0: #{egcn_forward.3}
  #allocation0 [shape = 'u32[]', space=smem, size = 0x4, offset = 0x4, fixed_abs, tag = 'smem constant byte address 0x4 - core index']
  #allocation1 [shape = 'u32[72,128]{1,0:T(1,128)}', space=vmem, size = 0x9000, scoped, tag = 'internal scratch']
  %s0 = inlined_call_operand.vmem [shape: bf16[128,128], index: 0, kind: input, shape index: {}]
  %s1 = inlined_call_operand.hbm [shape: bf16[128,512], index: 1, kind: input, shape index: {}]
  %s2 = inlined_call_operand.hbm [shape: bf16[4,128,128], index: 2, kind: input, shape index: {}]
  %s3 = inlined_call_operand.vmem [shape: f32[128,128], index: 3, kind: output, shape index: {}]
  %s4 = sld [smem:[#allocation0]]
  $region30: #{egcn_forward.3} parent=0
    _
  %s6 = ssub.s32 1, %s4
  %s7 = scalar_select 0, %s6, %s4
  $region1: #{egcn_forward.3} parent=0
    #allocation2 [shape = 'u8[131072]{0}', space=vmem, size = 0x20000, scoped, tag = 'input window, operand 1, single buffered']
    #allocation3 [shape = 's32[1]{0}', space=sflag, size = 0x4, scoped, tag = 'scoped memory for egcn_forward.3']
    #allocation4 [shape = 'u8[131072]{0}', space=vmem, size = 0x20000, scoped, tag = 'input window, operand 2, single buffered']
    #allocation5 [shape = 's32[1]{0}', space=sflag, size = 0x4, scoped, tag = 'scoped memory for egcn_forward.3']
    %8 = vsyncpa [#allocation3], 0
    %9 = vsyncpa [#allocation5], 0
    // Predicated region
    $region2: #{egcn_forward.3} parent=1 // pred_check
      _
    $region3: #{egcn_forward.3} parent=1 // pred_check_branch
      %11 = sbr.rel (0) target = $region5
    $region4: #{egcn_forward.3} parent=1 // pred_region
      _
    $region5: #{egcn_forward.3} parent=1 // pred_fallthru
      _
    // Predicated region
    $region6: #{egcn_forward.3} parent=1 // pred_check
      _
    $region7: #{egcn_forward.3} parent=1 // pred_check_branch
      %13 = sbr.rel (0) target = $region9
    $region8: #{egcn_forward.3} parent=1 // pred_region
      %15 = vsyncadd [#allocation3], 0
      %s16 = sshll.u32 %s1, 4
      %s17 = int_to_ptr.hbm [resolvable:$true] %s16
      %s18 = sshll.u32 [#allocation2], 4
      %s19 = int_to_ptr.vmem [resolvable:$true] %s18
      %24 = dma.hbm_to_vmem [thread:$0]  %s17, 4096, %s19, [#allocation3], 256, 256, 16
    $region9: #{egcn_forward.3} parent=1 // pred_fallthru
      _
    // Predicated region
    $region10: #{egcn_forward.3} parent=1 // pred_check
      _
    $region11: #{egcn_forward.3} parent=1 // pred_check_branch
      %26 = sbr.rel (0) target = $region13
    $region12: #{egcn_forward.3} parent=1 // pred_region
      %28 = vsyncadd [#allocation5], 0
      %s29 = sshll.u32 %s2, 4
      %s30 = int_to_ptr.hbm [resolvable:$true] %s29
      %s31 = sshll.u32 [#allocation4], 4
      %s32 = int_to_ptr.vmem [resolvable:$true] %s31
      %37 = dma.hbm_to_vmem [thread:$0]  %s30, 4096, %s32, [#allocation5], 64, 64, 4
    $region13: #{egcn_forward.3} parent=1 // pred_fallthru
      _
    // Predicated region
    $region14: #{egcn_forward.3} parent=1 // pred_check
      _
    $region15: #{egcn_forward.3} parent=1 // pred_check_branch
      %39 = sbr.rel (0) target = $region17
    $region16: #{egcn_forward.3} parent=1 // pred_region
      %41 = dma.done [#allocation3], 4096
    $region17: #{egcn_forward.3} parent=1 // pred_fallthru
      _
    // Predicated region
    $region18: #{egcn_forward.3} parent=1 // pred_check
      _
    $region19: #{egcn_forward.3} parent=1 // pred_check_branch
      %43 = sbr.rel (0) target = $region21
    $region20: #{egcn_forward.3} parent=1 // pred_region
      %45 = dma.done [#allocation5], 4096
    $region21: #{egcn_forward.3} parent=1 // pred_fallthru
      _
    %v46 = vld [vmem:[%s0] sm:$0xf]
    %v47 = vld [vmem:[%s0 + $0x4] sm:$0xf]
    %v48 = vld [vmem:[%s0 + $0x8] sm:$0xf]
    %v49 = vld [vmem:[%s0 + $0xc] sm:$0xf]
    %v50 = vld [vmem:[%s0 + $0x10] sm:$0xf]
    %v51 = vld [vmem:[%s0 + $0x14] sm:$0xf]
    %v52 = vld [vmem:[%s0 + $0x18] sm:$0xf]
    %v53 = vld [vmem:[%s0 + $0x1c] sm:$0xf]
    %v54 = vld [vmem:[%s0 + $0x20] sm:$0xf]
    %v55 = vld [vmem:[%s0 + $0x24] sm:$0xf]
    %v56 = vld [vmem:[%s0 + $0x28] sm:$0xf]
    %v57 = vld [vmem:[%s0 + $0x2c] sm:$0xf]
    %v58 = vld [vmem:[%s0 + $0x30] sm:$0xf]
    %v59 = vld [vmem:[%s0 + $0x34] sm:$0xf]
    %v60 = vld [vmem:[%s0 + $0x38] sm:$0xf]
    %v61 = vld [vmem:[%s0 + $0x3c] sm:$0xf]
    %v62 = vld [vmem:[#allocation2] sm:$0xf]
    %v63 = vld [vmem:[#allocation2 + $0x10] sm:$0xf]
    %v64 = vld [vmem:[#allocation2 + $0x20] sm:$0xf]
    %v65 = vld [vmem:[#allocation2 + $0x30] sm:$0xf]
    %v66 = vld [vmem:[#allocation2 + $0x40] sm:$0xf]
    %v67 = vld [vmem:[#allocation2 + $0x50] sm:$0xf]
    %v68 = vld [vmem:[#allocation2 + $0x60] sm:$0xf]
    %v69 = vld [vmem:[#allocation2 + $0x70] sm:$0xf]
    %v70 = vld [vmem:[#allocation2 + $0x80] sm:$0xf]
    %v71 = vld [vmem:[#allocation2 + $0x90] sm:$0xf]
    %v72 = vld [vmem:[#allocation2 + $0xa0] sm:$0xf]
    %v73 = vld [vmem:[#allocation2 + $0xb0] sm:$0xf]
    %v74 = vld [vmem:[#allocation2 + $0xc0] sm:$0xf]
    %v75 = vld [vmem:[#allocation2 + $0xd0] sm:$0xf]
    %v76 = vld [vmem:[#allocation2 + $0xe0] sm:$0xf]
    %v77 = vld [vmem:[#allocation2 + $0xf0] sm:$0xf]
    %v94 = vunpack.c.l.b16 %v46
    %v95 = vunpack.c.l.b16 %v47
    %v96 = vunpack.c.l.b16 %v48
    %v97 = vunpack.c.l.b16 %v49
    %v98 = vunpack.c.l.b16 %v50
    %v99 = vunpack.c.l.b16 %v51
    %v100 = vunpack.c.l.b16 %v52
    %v101 = vunpack.c.l.b16 %v53
    %v102 = vunpack.c.l.b16 %v54
    %v103 = vunpack.c.l.b16 %v55
    %v104 = vunpack.c.l.b16 %v56
    %v105 = vunpack.c.l.b16 %v57
    %v106 = vunpack.c.l.b16 %v58
    %v107 = vunpack.c.l.b16 %v59
    %v108 = vunpack.c.l.b16 %v60
    %v109 = vunpack.c.l.b16 %v61
    %v110 = vpack.c.b16 %v95, %v94
    %v111 = vpack.c.b16 %v97, %v96
    %v112 = vpack.c.b16 %v99, %v98
    %v113 = vpack.c.b16 %v101, %v100
    %v114 = vpack.c.b16 %v103, %v102
    %v115 = vpack.c.b16 %v105, %v104
    %v116 = vpack.c.b16 %v107, %v106
    %v117 = vpack.c.b16 %v109, %v108
    %v142 = vunpack.c.l.b16 %v62
    %v143 = vunpack.c.l.b16 %v63
    %v144 = vunpack.c.l.b16 %v64
    %v145 = vunpack.c.l.b16 %v65
    %v146 = vunpack.c.l.b16 %v66
    %v147 = vunpack.c.l.b16 %v67
    %v148 = vunpack.c.l.b16 %v68
    %v149 = vunpack.c.l.b16 %v69
    %v150 = vunpack.c.l.b16 %v70
    %v151 = vunpack.c.l.b16 %v71
    %v152 = vunpack.c.l.b16 %v72
    %v153 = vunpack.c.l.b16 %v73
    %v154 = vunpack.c.l.b16 %v74
    %v155 = vunpack.c.l.b16 %v75
    %v156 = vunpack.c.l.b16 %v76
    %v157 = vunpack.c.l.b16 %v77
    %v158 = vpack.c.b16 %v143, %v142
    %v159 = vpack.c.b16 %v145, %v144
    %v160 = vpack.c.b16 %v147, %v146
    %v161 = vpack.c.b16 %v149, %v148
    %v162 = vpack.c.b16 %v151, %v150
    %v163 = vpack.c.b16 %v153, %v152
    %v164 = vpack.c.b16 %v155, %v154
    %v165 = vpack.c.b16 %v157, %v156
    %174 = vmatpush.bf16.msra.mxu0 %v165
    %175 = vmatpush.bf16.msra.mxu0 %v164
    %176 = vmatpush.bf16.msra.mxu0 %v163
    %177 = vmatpush.bf16.msra.mxu0 %v162
    %178 = vmatpush.bf16.msra.mxu0 %v161
    %179 = vmatpush.bf16.msra.mxu0 %v160
    %180 = vmatpush.bf16.msra.mxu0 %v159
    %181 = vmatpush.bf16.msra.mxu0 %v158
    %182 = vmatmul.bf16.gmra.mxu0 %v110
    %v183 = vpop.f32.mrf.mxu0
    %v184 = vadd.f32 0.0, %v183
    %v185 = vpop.f32.mrf.mxu0
    %v186 = vadd.f32 0.0, %v185
    %187 = vmatmul.bf16.gmra.mxu0 %v111
    %v188 = vpop.f32.mrf.mxu0
    %v189 = vadd.f32 0.0, %v188
    %v190 = vpop.f32.mrf.mxu0
    %v191 = vadd.f32 0.0, %v190
    %192 = vmatmul.bf16.gmra.mxu0 %v112
    %v193 = vpop.f32.mrf.mxu0
    %v194 = vadd.f32 0.0, %v193
    %v195 = vpop.f32.mrf.mxu0
    %v196 = vadd.f32 0.0, %v195
    %197 = vmatmul.bf16.gmra.mxu0 %v113
    %v198 = vpop.f32.mrf.mxu0
    %v199 = vadd.f32 0.0, %v198
    %v200 = vpop.f32.mrf.mxu0
    %v201 = vadd.f32 0.0, %v200
    %202 = vmatmul.bf16.gmra.mxu0 %v114
    %v203 = vpop.f32.mrf.mxu0
    %v204 = vadd.f32 0.0, %v203
    %v205 = vpop.f32.mrf.mxu0
    %v206 = vadd.f32 0.0, %v205
    %207 = vmatmul.bf16.gmra.mxu0 %v115
    %v208 = vpop.f32.mrf.mxu0
    %v209 = vadd.f32 0.0, %v208
    %v210 = vpop.f32.mrf.mxu0
    %v211 = vadd.f32 0.0, %v210
    %212 = vmatmul.bf16.gmra.mxu0 %v116
    %v213 = vpop.f32.mrf.mxu0
    %v214 = vadd.f32 0.0, %v213
    %v215 = vpop.f32.mrf.mxu0
    %v216 = vadd.f32 0.0, %v215
    %217 = vmatmul.bf16.gmra.mxu0 %v117
    %v218 = vpop.f32.mrf.mxu0
    %v219 = vadd.f32 0.0, %v218
    %v220 = vpop.f32.mrf.mxu0
    %v221 = vadd.f32 0.0, %v220
    %222 = vdwg.mxu0
    %v223 = vpack.c.bf16 %v186, %v184
    %v224 = vpack.c.bf16 %v191, %v189
    %v225 = vpack.c.bf16 %v196, %v194
    %v226 = vpack.c.bf16 %v201, %v199
    %v227 = vpack.c.bf16 %v206, %v204
    %v228 = vpack.c.bf16 %v211, %v209
    %v229 = vpack.c.bf16 %v216, %v214
    %v230 = vpack.c.bf16 %v221, %v219
    %v231 = vld [vmem:[#allocation4] sm:$0xf]
    %v232 = vld [vmem:[#allocation4 + $0x4] sm:$0xf]
    %v233 = vld [vmem:[#allocation4 + $0x8] sm:$0xf]
    %v234 = vld [vmem:[#allocation4 + $0xc] sm:$0xf]
    %v235 = vld [vmem:[#allocation4 + $0x10] sm:$0xf]
    %v236 = vld [vmem:[#allocation4 + $0x14] sm:$0xf]
    %v237 = vld [vmem:[#allocation4 + $0x18] sm:$0xf]
    %v238 = vld [vmem:[#allocation4 + $0x1c] sm:$0xf]
    %v239 = vld [vmem:[#allocation4 + $0x20] sm:$0xf]
    %v240 = vld [vmem:[#allocation4 + $0x24] sm:$0xf]
    %v241 = vld [vmem:[#allocation4 + $0x28] sm:$0xf]
    %v242 = vld [vmem:[#allocation4 + $0x2c] sm:$0xf]
    %v243 = vld [vmem:[#allocation4 + $0x30] sm:$0xf]
    %v244 = vld [vmem:[#allocation4 + $0x34] sm:$0xf]
    %v245 = vld [vmem:[#allocation4 + $0x38] sm:$0xf]
    %v246 = vld [vmem:[#allocation4 + $0x3c] sm:$0xf]
    %v247 = vld [vmem:[#allocation2 + $0x4] sm:$0xf]
    %v248 = vld [vmem:[#allocation2 + $0x14] sm:$0xf]
    %v249 = vld [vmem:[#allocation2 + $0x24] sm:$0xf]
    %v250 = vld [vmem:[#allocation2 + $0x34] sm:$0xf]
    %v251 = vld [vmem:[#allocation2 + $0x44] sm:$0xf]
    %v252 = vld [vmem:[#allocation2 + $0x54] sm:$0xf]
    %v253 = vld [vmem:[#allocation2 + $0x64] sm:$0xf]
    %v254 = vld [vmem:[#allocation2 + $0x74] sm:$0xf]
    %v255 = vld [vmem:[#allocation2 + $0x84] sm:$0xf]
    %v256 = vld [vmem:[#allocation2 + $0x94] sm:$0xf]
    %v257 = vld [vmem:[#allocation2 + $0xa4] sm:$0xf]
    %v258 = vld [vmem:[#allocation2 + $0xb4] sm:$0xf]
    %v259 = vld [vmem:[#allocation2 + $0xc4] sm:$0xf]
    %v260 = vld [vmem:[#allocation2 + $0xd4] sm:$0xf]
    %v261 = vld [vmem:[#allocation2 + $0xe4] sm:$0xf]
    %v262 = vld [vmem:[#allocation2 + $0xf4] sm:$0xf]
    %v279 = vunpack.c.l.b16 %v247
    %v280 = vunpack.c.l.b16 %v248
    %v281 = vunpack.c.l.b16 %v249
    %v282 = vunpack.c.l.b16 %v250
    %v283 = vunpack.c.l.b16 %v251
    %v284 = vunpack.c.l.b16 %v252
    %v285 = vunpack.c.l.b16 %v253
    %v286 = vunpack.c.l.b16 %v254
    %v287 = vunpack.c.l.b16 %v255
    %v288 = vunpack.c.l.b16 %v256
    %v289 = vunpack.c.l.b16 %v257
    %v290 = vunpack.c.l.b16 %v258
    %v291 = vunpack.c.l.b16 %v259
    %v292 = vunpack.c.l.b16 %v260
    %v293 = vunpack.c.l.b16 %v261
    %v294 = vunpack.c.l.b16 %v262
    %v295 = vpack.c.b16 %v280, %v279
    %v296 = vpack.c.b16 %v282, %v281
    %v297 = vpack.c.b16 %v284, %v283
    %v298 = vpack.c.b16 %v286, %v285
    %v299 = vpack.c.b16 %v288, %v287
    %v300 = vpack.c.b16 %v290, %v289
    %v301 = vpack.c.b16 %v292, %v291
    %v302 = vpack.c.b16 %v294, %v293
    %311 = vmatpush.bf16.msra.mxu0 %v302
    %312 = vmatpush.bf16.msra.mxu0 %v301
    %313 = vmatpush.bf16.msra.mxu0 %v300
    %314 = vmatpush.bf16.msra.mxu0 %v299
    %315 = vmatpush.bf16.msra.mxu0 %v298
    %316 = vmatpush.bf16.msra.mxu0 %v297
    %317 = vmatpush.bf16.msra.mxu0 %v296
    %318 = vmatpush.bf16.msra.mxu0 %v295
    %319 = vmatmul.bf16.gmra.mxu0 %v110
    %v320 = vpop.f32.mrf.mxu0
    %v321 = vadd.f32 0.0, %v320
    %v322 = vpop.f32.mrf.mxu0
    %v323 = vadd.f32 0.0, %v322
    %324 = vmatmul.bf16.gmra.mxu0 %v111
    %v325 = vpop.f32.mrf.mxu0
    %v326 = vadd.f32 0.0, %v325
    %v327 = vpop.f32.mrf.mxu0
    %v328 = vadd.f32 0.0, %v327
    %329 = vmatmul.bf16.gmra.mxu0 %v112
    %v330 = vpop.f32.mrf.mxu0
    %v331 = vadd.f32 0.0, %v330
    %v332 = vpop.f32.mrf.mxu0
    %v333 = vadd.f32 0.0, %v332
    %334 = vmatmul.bf16.gmra.mxu0 %v113
    %v335 = vpop.f32.mrf.mxu0
    %v336 = vadd.f32 0.0, %v335
    %v337 = vpop.f32.mrf.mxu0
    %v338 = vadd.f32 0.0, %v337
    %339 = vmatmul.bf16.gmra.mxu0 %v114
    %v340 = vpop.f32.mrf.mxu0
    %v341 = vadd.f32 0.0, %v340
    %v342 = vpop.f32.mrf.mxu0
    %v343 = vadd.f32 0.0, %v342
    %344 = vmatmul.bf16.gmra.mxu0 %v115
    %v345 = vpop.f32.mrf.mxu0
    %v346 = vadd.f32 0.0, %v345
    %v347 = vpop.f32.mrf.mxu0
    %v348 = vadd.f32 0.0, %v347
    %349 = vmatmul.bf16.gmra.mxu0 %v116
    %v350 = vpop.f32.mrf.mxu0
    %v351 = vadd.f32 0.0, %v350
    %v352 = vpop.f32.mrf.mxu0
    %v353 = vadd.f32 0.0, %v352
    %354 = vmatmul.bf16.gmra.mxu0 %v117
    %v355 = vpop.f32.mrf.mxu0
    %v356 = vadd.f32 0.0, %v355
    %v357 = vpop.f32.mrf.mxu0
    %v358 = vadd.f32 0.0, %v357
    %359 = vdwg.mxu0
    %v360 = vpack.c.bf16 %v323, %v321
    %v361 = vpack.c.bf16 %v328, %v326
    %v362 = vpack.c.bf16 %v333, %v331
    %v363 = vpack.c.bf16 %v338, %v336
    %v364 = vpack.c.bf16 %v343, %v341
    %v365 = vpack.c.bf16 %v348, %v346
    %v366 = vpack.c.bf16 %v353, %v351
    %v367 = vpack.c.bf16 %v358, %v356
    %s368 = scalar_lea.vmem [#allocation4], 64
    %v369 = vld [vmem:[%s368] sm:$0xf]
    %v370 = vld [vmem:[%s368 + $0x4] sm:$0xf]
    %v371 = vld [vmem:[%s368 + $0x8] sm:$0xf]
    %v372 = vld [vmem:[%s368 + $0xc] sm:$0xf]
    %v373 = vld [vmem:[%s368 + $0x10] sm:$0xf]
    %v374 = vld [vmem:[%s368 + $0x14] sm:$0xf]
    %v375 = vld [vmem:[%s368 + $0x18] sm:$0xf]
    %v376 = vld [vmem:[%s368 + $0x1c] sm:$0xf]
    %v377 = vld [vmem:[%s368 + $0x20] sm:$0xf]
    %v378 = vld [vmem:[%s368 + $0x24] sm:$0xf]
    %v379 = vld [vmem:[%s368 + $0x28] sm:$0xf]
    %v380 = vld [vmem:[%s368 + $0x2c] sm:$0xf]
    %v381 = vld [vmem:[%s368 + $0x30] sm:$0xf]
    %v382 = vld [vmem:[%s368 + $0x34] sm:$0xf]
    %v383 = vld [vmem:[%s368 + $0x38] sm:$0xf]
    %v384 = vld [vmem:[%s368 + $0x3c] sm:$0xf]
    %v401 = vunpack.c.l.b16 %v369
    %v402 = vunpack.c.l.b16 %v370
    %v403 = vunpack.c.l.b16 %v371
    %v404 = vunpack.c.l.b16 %v372
    %v405 = vunpack.c.l.b16 %v373
    %v406 = vunpack.c.l.b16 %v374
    %v407 = vunpack.c.l.b16 %v375
    %v408 = vunpack.c.l.b16 %v376
    %v409 = vunpack.c.l.b16 %v377
    %v410 = vunpack.c.l.b16 %v378
    %v411 = vunpack.c.l.b16 %v379
    %v412 = vunpack.c.l.b16 %v380
    %v413 = vunpack.c.l.b16 %v381
    %v414 = vunpack.c.l.b16 %v382
    %v415 = vunpack.c.l.b16 %v383
    %v416 = vunpack.c.l.b16 %v384
    %v417 = vpack.c.b16 %v402, %v401
    %v418 = vpack.c.b16 %v404, %v403
    %v419 = vpack.c.b16 %v406, %v405
    %v420 = vpack.c.b16 %v408, %v407
    %v421 = vpack.c.b16 %v410, %v409
    %v422 = vpack.c.b16 %v412, %v411
    %v423 = vpack.c.b16 %v414, %v413
    %v424 = vpack.c.b16 %v416, %v415
    %433 = vmatpush.bf16.msra.mxu0 %v367
    %434 = vmatpush.bf16.msra.mxu0 %v366
    %435 = vmatpush.bf16.msra.mxu0 %v365
    %436 = vmatpush.bf16.msra.mxu0 %v364
    %437 = vmatpush.bf16.msra.mxu0 %v363
    %438 = vmatpush.bf16.msra.mxu0 %v362
    %439 = vmatpush.bf16.msra.mxu0 %v361
    %440 = vmatpush.bf16.msra.mxu0 %v360
    %441 = vmatmul.bf16.gmra.mxu0 %v417
    %v442 = vpop.f32.mrf.mxu0
    %v443 = vadd.f32 0.0, %v442
    %v444 = vpop.f32.mrf.mxu0
    %v445 = vadd.f32 0.0, %v444
    %446 = vmatmul.bf16.gmra.mxu0 %v418
    %v447 = vpop.f32.mrf.mxu0
    %v448 = vadd.f32 0.0, %v447
    %v449 = vpop.f32.mrf.mxu0
    %v450 = vadd.f32 0.0, %v449
    %451 = vmatmul.bf16.gmra.mxu0 %v419
    %v452 = vpop.f32.mrf.mxu0
    %v453 = vadd.f32 0.0, %v452
    %v454 = vpop.f32.mrf.mxu0
    %v455 = vadd.f32 0.0, %v454
    %456 = vmatmul.bf16.gmra.mxu0 %v420
    %v457 = vpop.f32.mrf.mxu0
    %v458 = vadd.f32 0.0, %v457
    %v459 = vpop.f32.mrf.mxu0
    %v460 = vadd.f32 0.0, %v459
    %461 = vmatmul.bf16.gmra.mxu0 %v421
    %v462 = vpop.f32.mrf.mxu0
    %v463 = vadd.f32 0.0, %v462
    %v464 = vpop.f32.mrf.mxu0
    %v465 = vadd.f32 0.0, %v464
    %466 = vmatmul.bf16.gmra.mxu0 %v422
    %v467 = vpop.f32.mrf.mxu0
    %v468 = vadd.f32 0.0, %v467
    %v469 = vpop.f32.mrf.mxu0
    %v470 = vadd.f32 0.0, %v469
    %471 = vmatmul.bf16.gmra.mxu0 %v423
    %v472 = vpop.f32.mrf.mxu0
    %v473 = vadd.f32 0.0, %v472
    %v474 = vpop.f32.mrf.mxu0
    %v475 = vadd.f32 0.0, %v474
    %476 = vmatmul.bf16.gmra.mxu0 %v424
    %v477 = vpop.f32.mrf.mxu0
    %v478 = vadd.f32 0.0, %v477
    %v479 = vpop.f32.mrf.mxu0
    %v480 = vadd.f32 0.0, %v479
    %481 = vdwg.mxu0
    %v498 = vunpack.c.l.b16 %v231
    %v499 = vunpack.c.l.b16 %v232
    %v500 = vunpack.c.l.b16 %v233
    %v501 = vunpack.c.l.b16 %v234
    %v502 = vunpack.c.l.b16 %v235
    %v503 = vunpack.c.l.b16 %v236
    %v504 = vunpack.c.l.b16 %v237
    %v505 = vunpack.c.l.b16 %v238
    %v506 = vunpack.c.l.b16 %v239
    %v507 = vunpack.c.l.b16 %v240
    %v508 = vunpack.c.l.b16 %v241
    %v509 = vunpack.c.l.b16 %v242
    %v510 = vunpack.c.l.b16 %v243
    %v511 = vunpack.c.l.b16 %v244
    %v512 = vunpack.c.l.b16 %v245
    %v513 = vunpack.c.l.b16 %v246
    %v514 = vpack.c.b16 %v499, %v498
    %v515 = vpack.c.b16 %v501, %v500
    %v516 = vpack.c.b16 %v503, %v502
    %v517 = vpack.c.b16 %v505, %v504
    %v518 = vpack.c.b16 %v507, %v506
    %v519 = vpack.c.b16 %v509, %v508
    %v520 = vpack.c.b16 %v511, %v510
    %v521 = vpack.c.b16 %v513, %v512
    %530 = vmatpush.bf16.msra.mxu0 %v230
    %531 = vmatpush.bf16.msra.mxu0 %v229
    %532 = vmatpush.bf16.msra.mxu0 %v228
    %533 = vmatpush.bf16.msra.mxu0 %v227
    %534 = vmatpush.bf16.msra.mxu0 %v226
    %535 = vmatpush.bf16.msra.mxu0 %v225
    %536 = vmatpush.bf16.msra.mxu0 %v224
    %537 = vmatpush.bf16.msra.mxu0 %v223
    %538 = vmatmul.bf16.gmra.mxu0 %v514
    %v539 = vpop.f32.mrf.mxu0
    %v540 = vadd.f32 %v443, %v539
    %v541 = vpop.f32.mrf.mxu0
    %v542 = vadd.f32 %v445, %v541
    %543 = vmatmul.bf16.gmra.mxu0 %v515
    %v544 = vpop.f32.mrf.mxu0
    %v545 = vadd.f32 %v448, %v544
    %v546 = vpop.f32.mrf.mxu0
    %v547 = vadd.f32 %v450, %v546
    %548 = vmatmul.bf16.gmra.mxu0 %v516
    %v549 = vpop.f32.mrf.mxu0
    %v550 = vadd.f32 %v453, %v549
    %v551 = vpop.f32.mrf.mxu0
    %v552 = vadd.f32 %v455, %v551
    %553 = vmatmul.bf16.gmra.mxu0 %v517
    %v554 = vpop.f32.mrf.mxu0
    %v555 = vadd.f32 %v458, %v554
    %v556 = vpop.f32.mrf.mxu0
    %v557 = vadd.f32 %v460, %v556
    %558 = vmatmul.bf16.gmra.mxu0 %v518
    %v559 = vpop.f32.mrf.mxu0
    %v560 = vadd.f32 %v463, %v559
    %v561 = vpop.f32.mrf.mxu0
    %v562 = vadd.f32 %v465, %v561
    %563 = vmatmul.bf16.gmra.mxu0 %v519
    %v564 = vpop.f32.mrf.mxu0
    %v565 = vadd.f32 %v468, %v564
    %v566 = vpop.f32.mrf.mxu0
    %v567 = vadd.f32 %v470, %v566
    %568 = vmatmul.bf16.gmra.mxu0 %v520
    %v569 = vpop.f32.mrf.mxu0
    %v570 = vadd.f32 %v473, %v569
    %v571 = vpop.f32.mrf.mxu0
    %v572 = vadd.f32 %v475, %v571
    %573 = vmatmul.bf16.gmra.mxu0 %v521
    %v574 = vpop.f32.mrf.mxu0
    %v575 = vadd.f32 %v478, %v574
    %v576 = vpop.f32.mrf.mxu0
    %v577 = vadd.f32 %v480, %v576
    %578 = vdwg.mxu0
    %v579 = vld [vmem:[#allocation2 + $0x8] sm:$0xf]
    %v580 = vld [vmem:[#allocation2 + $0x18] sm:$0xf]
    %v581 = vld [vmem:[#allocation2 + $0x28] sm:$0xf]
    %v582 = vld [vmem:[#allocation2 + $0x38] sm:$0xf]
    %v583 = vld [vmem:[#allocation2 + $0x48] sm:$0xf]
    %v584 = vld [vmem:[#allocation2 + $0x58] sm:$0xf]
    %v585 = vld [vmem:[#allocation2 + $0x68] sm:$0xf]
    %v586 = vld [vmem:[#allocation2 + $0x78] sm:$0xf]
    %v587 = vld [vmem:[#allocation2 + $0x88] sm:$0xf]
    %v588 = vld [vmem:[#allocation2 + $0x98] sm:$0xf]
    %v589 = vld [vmem:[#allocation2 + $0xa8] sm:$0xf]
    %v590 = vld [vmem:[#allocation2 + $0xb8] sm:$0xf]
    %v591 = vld [vmem:[#allocation2 + $0xc8] sm:$0xf]
    %v592 = vld [vmem:[#allocation2 + $0xd8] sm:$0xf]
    %v593 = vld [vmem:[#allocation2 + $0xe8] sm:$0xf]
    %v594 = vld [vmem:[#allocation2 + $0xf8] sm:$0xf]
    %v611 = vunpack.c.l.b16 %v579
    %v612 = vunpack.c.l.b16 %v580
    %v613 = vunpack.c.l.b16 %v581
    %v614 = vunpack.c.l.b16 %v582
    %v615 = vunpack.c.l.b16 %v583
    %v616 = vunpack.c.l.b16 %v584
    %v617 = vunpack.c.l.b16 %v585
    %v618 = vunpack.c.l.b16 %v586
    %v619 = vunpack.c.l.b16 %v587
    %v620 = vunpack.c.l.b16 %v588
    %v621 = vunpack.c.l.b16 %v589
    %v622 = vunpack.c.l.b16 %v590
    %v623 = vunpack.c.l.b16 %v591
    %v624 = vunpack.c.l.b16 %v592
    %v625 = vunpack.c.l.b16 %v593
    %v626 = vunpack.c.l.b16 %v594
    %v627 = vpack.c.b16 %v612, %v611
    %v628 = vpack.c.b16 %v614, %v613
    %v629 = vpack.c.b16 %v616, %v615
    %v630 = vpack.c.b16 %v618, %v617
    %v631 = vpack.c.b16 %v620, %v619
    %v632 = vpack.c.b16 %v622, %v621
    %v633 = vpack.c.b16 %v624, %v623
    %v634 = vpack.c.b16 %v626, %v625
    %643 = vmatpush.bf16.msra.mxu0 %v634
    %644 = vmatpush.bf16.msra.mxu0 %v633
    %645 = vmatpush.bf16.msra.mxu0 %v632
    %646 = vmatpush.bf16.msra.mxu0 %v631
    %647 = vmatpush.bf16.msra.mxu0 %v630
    %648 = vmatpush.bf16.msra.mxu0 %v629
    %649 = vmatpush.bf16.msra.mxu0 %v628
    %650 = vmatpush.bf16.msra.mxu0 %v627
    %651 = vmatmul.bf16.gmra.mxu0 %v110
    %v652 = vpop.f32.mrf.mxu0
    %v653 = vadd.f32 0.0, %v652
    %v654 = vpop.f32.mrf.mxu0
    %v655 = vadd.f32 0.0, %v654
    %656 = vmatmul.bf16.gmra.mxu0 %v111
    %v657 = vpop.f32.mrf.mxu0
    %v658 = vadd.f32 0.0, %v657
    %v659 = vpop.f32.mrf.mxu0
    %v660 = vadd.f32 0.0, %v659
    %661 = vmatmul.bf16.gmra.mxu0 %v112
    %v662 = vpop.f32.mrf.mxu0
    %v663 = vadd.f32 0.0, %v662
    %v664 = vpop.f32.mrf.mxu0
    %v665 = vadd.f32 0.0, %v664
    %666 = vmatmul.bf16.gmra.mxu0 %v113
    %v667 = vpop.f32.mrf.mxu0
    %v668 = vadd.f32 0.0, %v667
    %v669 = vpop.f32.mrf.mxu0
    %v670 = vadd.f32 0.0, %v669
    %671 = vmatmul.bf16.gmra.mxu0 %v114
    %v672 = vpop.f32.mrf.mxu0
    %v673 = vadd.f32 0.0, %v672
    %v674 = vpop.f32.mrf.mxu0
    %v675 = vadd.f32 0.0, %v674
    %676 = vmatmul.bf16.gmra.mxu0 %v115
    %v677 = vpop.f32.mrf.mxu0
    %v678 = vadd.f32 0.0, %v677
    %v679 = vpop.f32.mrf.mxu0
    %v680 = vadd.f32 0.0, %v679
    %681 = vmatmul.bf16.gmra.mxu0 %v116
    %v682 = vpop.f32.mrf.mxu0
    %v683 = vadd.f32 0.0, %v682
    %v684 = vpop.f32.mrf.mxu0
    %v685 = vadd.f32 0.0, %v684
    %686 = vmatmul.bf16.gmra.mxu0 %v117
    %v687 = vpop.f32.mrf.mxu0
    %v688 = vadd.f32 0.0, %v687
    %v689 = vpop.f32.mrf.mxu0
    %v690 = vadd.f32 0.0, %v689
    %691 = vdwg.mxu0
    %v692 = vpack.c.bf16 %v655, %v653
    %v693 = vpack.c.bf16 %v660, %v658
    %v694 = vpack.c.bf16 %v665, %v663
    %v695 = vpack.c.bf16 %v670, %v668
    %v696 = vpack.c.bf16 %v675, %v673
    %v697 = vpack.c.bf16 %v680, %v678
    %v698 = vpack.c.bf16 %v685, %v683
    %v699 = vpack.c.bf16 %v690, %v688
    %s700 = scalar_lea.vmem [#allocation4], 128
    %v701 = vld [vmem:[%s700] sm:$0xf]
    %v702 = vld [vmem:[%s700 + $0x4] sm:$0xf]
    %v703 = vld [vmem:[%s700 + $0x8] sm:$0xf]
    %v704 = vld [vmem:[%s700 + $0xc] sm:$0xf]
    %v705 = vld [vmem:[%s700 + $0x10] sm:$0xf]
    %v706 = vld [vmem:[%s700 + $0x14] sm:$0xf]
    %v707 = vld [vmem:[%s700 + $0x18] sm:$0xf]
    %v708 = vld [vmem:[%s700 + $0x1c] sm:$0xf]
    %v709 = vld [vmem:[%s700 + $0x20] sm:$0xf]
    %v710 = vld [vmem:[%s700 + $0x24] sm:$0xf]
    %v711 = vld [vmem:[%s700 + $0x28] sm:$0xf]
    %v712 = vld [vmem:[%s700 + $0x2c] sm:$0xf]
    %v713 = vld [vmem:[%s700 + $0x30] sm:$0xf]
    %v714 = vld [vmem:[%s700 + $0x34] sm:$0xf]
    %v715 = vld [vmem:[%s700 + $0x38] sm:$0xf]
    %v716 = vld [vmem:[%s700 + $0x3c] sm:$0xf]
    %v733 = vunpack.c.l.b16 %v701
    %v734 = vunpack.c.l.b16 %v702
    %v735 = vunpack.c.l.b16 %v703
    %v736 = vunpack.c.l.b16 %v704
    %v737 = vunpack.c.l.b16 %v705
    %v738 = vunpack.c.l.b16 %v706
    %v739 = vunpack.c.l.b16 %v707
    %v740 = vunpack.c.l.b16 %v708
    %v741 = vunpack.c.l.b16 %v709
    %v742 = vunpack.c.l.b16 %v710
    %v743 = vunpack.c.l.b16 %v711
    %v744 = vunpack.c.l.b16 %v712
    %v745 = vunpack.c.l.b16 %v713
    %v746 = vunpack.c.l.b16 %v714
    %v747 = vunpack.c.l.b16 %v715
    %v748 = vunpack.c.l.b16 %v716
    %v749 = vpack.c.b16 %v734, %v733
    %v750 = vpack.c.b16 %v736, %v735
    %v751 = vpack.c.b16 %v738, %v737
    %v752 = vpack.c.b16 %v740, %v739
    %v753 = vpack.c.b16 %v742, %v741
    %v754 = vpack.c.b16 %v744, %v743
    %v755 = vpack.c.b16 %v746, %v745
    %v756 = vpack.c.b16 %v748, %v747
    %765 = vmatpush.bf16.msra.mxu0 %v699
    %766 = vmatpush.bf16.msra.mxu0 %v698
    %767 = vmatpush.bf16.msra.mxu0 %v697
    %768 = vmatpush.bf16.msra.mxu0 %v696
    %769 = vmatpush.bf16.msra.mxu0 %v695
    %770 = vmatpush.bf16.msra.mxu0 %v694
    %771 = vmatpush.bf16.msra.mxu0 %v693
    %772 = vmatpush.bf16.msra.mxu0 %v692
    %773 = vmatmul.bf16.gmra.mxu0 %v749
    %v774 = vpop.f32.mrf.mxu0
    %v775 = vadd.f32 0.0, %v774
    %v776 = vpop.f32.mrf.mxu0
    %v777 = vadd.f32 0.0, %v776
    %778 = vmatmul.bf16.gmra.mxu0 %v750
    %v779 = vpop.f32.mrf.mxu0
    %v780 = vadd.f32 0.0, %v779
    %v781 = vpop.f32.mrf.mxu0
    %v782 = vadd.f32 0.0, %v781
    %783 = vmatmul.bf16.gmra.mxu0 %v751
    %v784 = vpop.f32.mrf.mxu0
    %v785 = vadd.f32 0.0, %v784
    %v786 = vpop.f32.mrf.mxu0
    %v787 = vadd.f32 0.0, %v786
    %788 = vmatmul.bf16.gmra.mxu0 %v752
    %v789 = vpop.f32.mrf.mxu0
    %v790 = vadd.f32 0.0, %v789
    %v791 = vpop.f32.mrf.mxu0
    %v792 = vadd.f32 0.0, %v791
    %793 = vmatmul.bf16.gmra.mxu0 %v753
    %v794 = vpop.f32.mrf.mxu0
    %v795 = vadd.f32 0.0, %v794
    %v796 = vpop.f32.mrf.mxu0
    %v797 = vadd.f32 0.0, %v796
    %798 = vmatmul.bf16.gmra.mxu0 %v754
    %v799 = vpop.f32.mrf.mxu0
    %v800 = vadd.f32 0.0, %v799
    %v801 = vpop.f32.mrf.mxu0
    %v802 = vadd.f32 0.0, %v801
    %803 = vmatmul.bf16.gmra.mxu0 %v755
    %v804 = vpop.f32.mrf.mxu0
    %v805 = vadd.f32 0.0, %v804
    %v806 = vpop.f32.mrf.mxu0
    %v807 = vadd.f32 0.0, %v806
    %808 = vmatmul.bf16.gmra.mxu0 %v756
    %v809 = vpop.f32.mrf.mxu0
    %v810 = vadd.f32 0.0, %v809
    %v811 = vpop.f32.mrf.mxu0
    %v812 = vadd.f32 0.0, %v811
    %813 = vdwg.mxu0
    %v814 = vadd.f32 %v540, %v775
    %v815 = vadd.f32 %v542, %v777
    %v816 = vadd.f32 %v545, %v780
    %v817 = vadd.f32 %v547, %v782
    %v818 = vadd.f32 %v550, %v785
    %v819 = vadd.f32 %v552, %v787
    %v820 = vadd.f32 %v555, %v790
    %v821 = vadd.f32 %v557, %v792
    %v822 = vadd.f32 %v560, %v795
    %v823 = vadd.f32 %v562, %v797
    %v824 = vadd.f32 %v565, %v800
    %v825 = vadd.f32 %v567, %v802
    %v826 = vadd.f32 %v570, %v805
    %v827 = vadd.f32 %v572, %v807
    %v828 = vadd.f32 %v575, %v810
    %v829 = vadd.f32 %v577, %v812
    %v830 = vld [vmem:[#allocation2 + $0xc] sm:$0xf]
    %v831 = vld [vmem:[#allocation2 + $0x1c] sm:$0xf]
    %v832 = vld [vmem:[#allocation2 + $0x2c] sm:$0xf]
    %v833 = vld [vmem:[#allocation2 + $0x3c] sm:$0xf]
    %v834 = vld [vmem:[#allocation2 + $0x4c] sm:$0xf]
    %v835 = vld [vmem:[#allocation2 + $0x5c] sm:$0xf]
    %v836 = vld [vmem:[#allocation2 + $0x6c] sm:$0xf]
    %v837 = vld [vmem:[#allocation2 + $0x7c] sm:$0xf]
    %v838 = vld [vmem:[#allocation2 + $0x8c] sm:$0xf]
    %v839 = vld [vmem:[#allocation2 + $0x9c] sm:$0xf]
    %v840 = vld [vmem:[#allocation2 + $0xac] sm:$0xf]
    %v841 = vld [vmem:[#allocation2 + $0xbc] sm:$0xf]
    %v842 = vld [vmem:[#allocation2 + $0xcc] sm:$0xf]
    %v843 = vld [vmem:[#allocation2 + $0xdc] sm:$0xf]
    %v844 = vld [vmem:[#allocation2 + $0xec] sm:$0xf]
    %v845 = vld [vmem:[#allocation2 + $0xfc] sm:$0xf]
    %v862 = vunpack.c.l.b16 %v830
    %v863 = vunpack.c.l.b16 %v831
    %v864 = vunpack.c.l.b16 %v832
    %v865 = vunpack.c.l.b16 %v833
    %v866 = vunpack.c.l.b16 %v834
    %v867 = vunpack.c.l.b16 %v835
    %v868 = vunpack.c.l.b16 %v836
    %v869 = vunpack.c.l.b16 %v837
    %v870 = vunpack.c.l.b16 %v838
    %v871 = vunpack.c.l.b16 %v839
    %v872 = vunpack.c.l.b16 %v840
    %v873 = vunpack.c.l.b16 %v841
    %v874 = vunpack.c.l.b16 %v842
    %v875 = vunpack.c.l.b16 %v843
    %v876 = vunpack.c.l.b16 %v844
    %v877 = vunpack.c.l.b16 %v845
    %v878 = vpack.c.b16 %v863, %v862
    %v879 = vpack.c.b16 %v865, %v864
    %v880 = vpack.c.b16 %v867, %v866
    %v881 = vpack.c.b16 %v869, %v868
    %v882 = vpack.c.b16 %v871, %v870
    %v883 = vpack.c.b16 %v873, %v872
    %v884 = vpack.c.b16 %v875, %v874
    %v885 = vpack.c.b16 %v877, %v876
    %894 = vmatpush.bf16.msra.mxu0 %v885
    %895 = vmatpush.bf16.msra.mxu0 %v884
    %896 = vmatpush.bf16.msra.mxu0 %v883
    %897 = vmatpush.bf16.msra.mxu0 %v882
    %898 = vmatpush.bf16.msra.mxu0 %v881
    %899 = vmatpush.bf16.msra.mxu0 %v880
    %900 = vmatpush.bf16.msra.mxu0 %v879
    %901 = vmatpush.bf16.msra.mxu0 %v878
    %902 = vmatmul.bf16.gmra.mxu0 %v110
    %v903 = vpop.f32.mrf.mxu0
    %v904 = vadd.f32 0.0, %v903
    %v905 = vpop.f32.mrf.mxu0
    %v906 = vadd.f32 0.0, %v905
    %907 = vmatmul.bf16.gmra.mxu0 %v111
    %v908 = vpop.f32.mrf.mxu0
    %v909 = vadd.f32 0.0, %v908
    %v910 = vpop.f32.mrf.mxu0
    %v911 = vadd.f32 0.0, %v910
    %912 = vmatmul.bf16.gmra.mxu0 %v112
    %v913 = vpop.f32.mrf.mxu0
    %v914 = vadd.f32 0.0, %v913
    %v915 = vpop.f32.mrf.mxu0
    %v916 = vadd.f32 0.0, %v915
    %917 = vmatmul.bf16.gmra.mxu0 %v113
    %v918 = vpop.f32.mrf.mxu0
    %v919 = vadd.f32 0.0, %v918
    %v920 = vpop.f32.mrf.mxu0
    %v921 = vadd.f32 0.0, %v920
    %922 = vmatmul.bf16.gmra.mxu0 %v114
    %v923 = vpop.f32.mrf.mxu0
    %v924 = vadd.f32 0.0, %v923
    %v925 = vpop.f32.mrf.mxu0
    %v926 = vadd.f32 0.0, %v925
    %927 = vmatmul.bf16.gmra.mxu0 %v115
    %v928 = vpop.f32.mrf.mxu0
    %v929 = vadd.f32 0.0, %v928
    %v930 = vpop.f32.mrf.mxu0
    %v931 = vadd.f32 0.0, %v930
    %932 = vmatmul.bf16.gmra.mxu0 %v116
    %v933 = vpop.f32.mrf.mxu0
    %v934 = vadd.f32 0.0, %v933
    %v935 = vpop.f32.mrf.mxu0
    %v936 = vadd.f32 0.0, %v935
    %937 = vmatmul.bf16.gmra.mxu0 %v117
    %v938 = vpop.f32.mrf.mxu0
    %v939 = vadd.f32 0.0, %v938
    %v940 = vpop.f32.mrf.mxu0
    %v941 = vadd.f32 0.0, %v940
    %942 = vdwg.mxu0
    %v943 = vpack.c.bf16 %v906, %v904
    %v944 = vpack.c.bf16 %v911, %v909
    %v945 = vpack.c.bf16 %v916, %v914
    %v946 = vpack.c.bf16 %v921, %v919
    %v947 = vpack.c.bf16 %v926, %v924
    %v948 = vpack.c.bf16 %v931, %v929
    %v949 = vpack.c.bf16 %v936, %v934
    %v950 = vpack.c.bf16 %v941, %v939
    %s951 = scalar_lea.vmem [#allocation4], 192
    %v952 = vld [vmem:[%s951] sm:$0xf]
    %v953 = vld [vmem:[%s951 + $0x4] sm:$0xf]
    %v954 = vld [vmem:[%s951 + $0x8] sm:$0xf]
    %v955 = vld [vmem:[%s951 + $0xc] sm:$0xf]
    %v956 = vld [vmem:[%s951 + $0x10] sm:$0xf]
    %v957 = vld [vmem:[%s951 + $0x14] sm:$0xf]
    %v958 = vld [vmem:[%s951 + $0x18] sm:$0xf]
    %v959 = vld [vmem:[%s951 + $0x1c] sm:$0xf]
    %v960 = vld [vmem:[%s951 + $0x20] sm:$0xf]
    %v961 = vld [vmem:[%s951 + $0x24] sm:$0xf]
    %v962 = vld [vmem:[%s951 + $0x28] sm:$0xf]
    %v963 = vld [vmem:[%s951 + $0x2c] sm:$0xf]
    %v964 = vld [vmem:[%s951 + $0x30] sm:$0xf]
    %v965 = vld [vmem:[%s951 + $0x34] sm:$0xf]
    %v966 = vld [vmem:[%s951 + $0x38] sm:$0xf]
    %v967 = vld [vmem:[%s951 + $0x3c] sm:$0xf]
    %v984 = vunpack.c.l.b16 %v952
    %v985 = vunpack.c.l.b16 %v953
    %v986 = vunpack.c.l.b16 %v954
    %v987 = vunpack.c.l.b16 %v955
    %v988 = vunpack.c.l.b16 %v956
    %v989 = vunpack.c.l.b16 %v957
    %v990 = vunpack.c.l.b16 %v958
    %v991 = vunpack.c.l.b16 %v959
    %v992 = vunpack.c.l.b16 %v960
    %v993 = vunpack.c.l.b16 %v961
    %v994 = vunpack.c.l.b16 %v962
    %v995 = vunpack.c.l.b16 %v963
    %v996 = vunpack.c.l.b16 %v964
    %v997 = vunpack.c.l.b16 %v965
    %v998 = vunpack.c.l.b16 %v966
    %v999 = vunpack.c.l.b16 %v967
    %v1000 = vpack.c.b16 %v985, %v984
    %v1001 = vpack.c.b16 %v987, %v986
    %v1002 = vpack.c.b16 %v989, %v988
    %v1003 = vpack.c.b16 %v991, %v990
    %v1004 = vpack.c.b16 %v993, %v992
    %v1005 = vpack.c.b16 %v995, %v994
    %v1006 = vpack.c.b16 %v997, %v996
    %v1007 = vpack.c.b16 %v999, %v998
    %1016 = vmatpush.bf16.msra.mxu0 %v950
    %1017 = vmatpush.bf16.msra.mxu0 %v949
    %1018 = vmatpush.bf16.msra.mxu0 %v948
    %1019 = vmatpush.bf16.msra.mxu0 %v947
    %1020 = vmatpush.bf16.msra.mxu0 %v946
    %1021 = vmatpush.bf16.msra.mxu0 %v945
    %1022 = vmatpush.bf16.msra.mxu0 %v944
    %1023 = vmatpush.bf16.msra.mxu0 %v943
    %1024 = vmatmul.bf16.gmra.mxu0 %v1000
    %v1025 = vpop.f32.mrf.mxu0
    %v1026 = vadd.f32 0.0, %v1025
    %v1027 = vpop.f32.mrf.mxu0
    %v1028 = vadd.f32 0.0, %v1027
    %1029 = vmatmul.bf16.gmra.mxu0 %v1001
    %v1030 = vpop.f32.mrf.mxu0
    %v1031 = vadd.f32 0.0, %v1030
    %v1032 = vpop.f32.mrf.mxu0
    %v1033 = vadd.f32 0.0, %v1032
    %1034 = vmatmul.bf16.gmra.mxu0 %v1002
    %v1035 = vpop.f32.mrf.mxu0
    %v1036 = vadd.f32 0.0, %v1035
    %v1037 = vpop.f32.mrf.mxu0
    %v1038 = vadd.f32 0.0, %v1037
    %1039 = vmatmul.bf16.gmra.mxu0 %v1003
    %v1040 = vpop.f32.mrf.mxu0
    %v1041 = vadd.f32 0.0, %v1040
    %v1042 = vpop.f32.mrf.mxu0
    %v1043 = vadd.f32 0.0, %v1042
    %1044 = vmatmul.bf16.gmra.mxu0 %v1004
    %v1045 = vpop.f32.mrf.mxu0
    %v1046 = vadd.f32 0.0, %v1045
    %v1047 = vpop.f32.mrf.mxu0
    %v1048 = vadd.f32 0.0, %v1047
    %1049 = vmatmul.bf16.gmra.mxu0 %v1005
    %v1050 = vpop.f32.mrf.mxu0
    %v1051 = vadd.f32 0.0, %v1050
    %v1052 = vpop.f32.mrf.mxu0
    %v1053 = vadd.f32 0.0, %v1052
    %1054 = vmatmul.bf16.gmra.mxu0 %v1006
    %v1055 = vpop.f32.mrf.mxu0
    %v1056 = vadd.f32 0.0, %v1055
    %v1057 = vpop.f32.mrf.mxu0
    %v1058 = vadd.f32 0.0, %v1057
    %1059 = vmatmul.bf16.gmra.mxu0 %v1007
    %v1060 = vpop.f32.mrf.mxu0
    %v1061 = vadd.f32 0.0, %v1060
    %v1062 = vpop.f32.mrf.mxu0
    %v1063 = vadd.f32 0.0, %v1062
    %1064 = vdwg.mxu0
    %v1065 = vadd.f32 %v814, %v1026
    %v1066 = vadd.f32 %v815, %v1028
    %v1067 = vadd.f32 %v816, %v1031
    %v1068 = vadd.f32 %v817, %v1033
    %v1069 = vadd.f32 %v818, %v1036
    %v1070 = vadd.f32 %v819, %v1038
    %v1071 = vadd.f32 %v820, %v1041
    %v1072 = vadd.f32 %v821, %v1043
    %v1073 = vadd.f32 %v822, %v1046
    %v1074 = vadd.f32 %v823, %v1048
    %v1075 = vadd.f32 %v824, %v1051
    %v1076 = vadd.f32 %v825, %v1053
    %v1077 = vadd.f32 %v826, %v1056
    %v1078 = vadd.f32 %v827, %v1058
    %v1079 = vadd.f32 %v828, %v1061
    %v1080 = vadd.f32 %v829, %v1063
    %v1081 = vmax.f32 %v1065, 0.0
    %v1082 = vmax.f32 %v1066, 0.0
    %v1083 = vmax.f32 %v1067, 0.0
    %v1084 = vmax.f32 %v1068, 0.0
    %v1085 = vmax.f32 %v1069, 0.0
    %v1086 = vmax.f32 %v1070, 0.0
    %v1087 = vmax.f32 %v1071, 0.0
    %v1088 = vmax.f32 %v1072, 0.0
    %v1089 = vmax.f32 %v1073, 0.0
    %v1090 = vmax.f32 %v1074, 0.0
    %v1091 = vmax.f32 %v1075, 0.0
    %v1092 = vmax.f32 %v1076, 0.0
    %v1093 = vmax.f32 %v1077, 0.0
    %v1094 = vmax.f32 %v1078, 0.0
    %v1095 = vmax.f32 %v1079, 0.0
    %v1096 = vmax.f32 %v1080, 0.0
    %1097 = vst [vmem:[%s3] sm:$0xff] %v1081
    %1098 = vst [vmem:[%s3 + $0x8] sm:$0xff] %v1082
    %1099 = vst [vmem:[%s3 + $0x10] sm:$0xff] %v1083
    %1100 = vst [vmem:[%s3 + $0x18] sm:$0xff] %v1084
    %1101 = vst [vmem:[%s3 + $0x20] sm:$0xff] %v1085
    %1102 = vst [vmem:[%s3 + $0x28] sm:$0xff] %v1086
    %1103 = vst [vmem:[%s3 + $0x30] sm:$0xff] %v1087
    %1104 = vst [vmem:[%s3 + $0x38] sm:$0xff] %v1088
    %1105 = vst [vmem:[%s3 + $0x40] sm:$0xff] %v1089
    %1106 = vst [vmem:[%s3 + $0x48] sm:$0xff] %v1090
    %1107 = vst [vmem:[%s3 + $0x50] sm:$0xff] %v1091
    %1108 = vst [vmem:[%s3 + $0x58] sm:$0xff] %v1092
    %1109 = vst [vmem:[%s3 + $0x60] sm:$0xff] %v1093
    %1110 = vst [vmem:[%s3 + $0x68] sm:$0xff] %v1094
    %1111 = vst [vmem:[%s3 + $0x70] sm:$0xff] %v1095
    %1112 = vst [vmem:[%s3 + $0x78] sm:$0xff] %v1096
    // Predicated region
    $region22: #{egcn_forward.3} parent=1 // pred_check
      _
    $region23: #{egcn_forward.3} parent=1 // pred_check_branch
      %1114 = sbr.rel (0) target = $region25
    $region24: #{egcn_forward.3} parent=1 // pred_region
      _
    $region25: #{egcn_forward.3} parent=1 // pred_fallthru
      _
    // Predicated region
    $region26: #{egcn_forward.3} parent=1 // pred_check
      _
    $region27: #{egcn_forward.3} parent=1 // pred_check_branch
      %1116 = sbr.rel (0) target = $region29
    $region28: #{egcn_forward.3} parent=1 // pred_region
      _
    $region29: #{egcn_forward.3} parent=1 // pred_fallthru
      _
    %1117 = vsyncpa [#allocation3], 1
    %1118 = vsyncpa [#allocation5], 1

</llo_original>
